<compile_context>
chip_gen: v7x
topology: tpu7x:2x2x1
jax: 0.10.0
libtpu: 0.0.40
codegen_flags: <defaults>
</compile_context>

<pallas_src>
import jax
import jax.numpy as jnp
from jax.experimental import pallas as pl
from jax.experimental.pallas import tpu as pltpu

_LANE = 128
_SUBLANE = 8


def _round_up(n, m):
    return (n + m - 1) // m * m


def _pad_to(a, shape):
    return jnp.pad(a, [(0, s - d) for d, s in zip(a.shape, shape)])


def _lstm_kernel(x_ref, wih_ref, whh_ref, b_ref, wlin_ref, blin_ref,
                 out_ref, gx_sc):
    T, Bp, D = x_ref.shape
    Hp = whh_ref.shape[0]
    mm_dtype = wih_ref.dtype          # bf16 (fast path) or f32 (exact path)

    # ---- 1) Input projection for ALL timesteps: one MXU matmul. ----
    # (T, Bp, D) -> (T*Bp, D): collapses leading dims only (Bp % 8 == 0, lane
    # dim preserved) => free re-tiling.  Contraction over the true K=D; Mosaic
    # zero-masks the MXU feed for the unaligned K.
    x_all = x_ref[...].reshape(T * Bp, D)
    gx = jnp.dot(x_all, wih_ref[...], preferred_element_type=jnp.float32)
    gx_sc[...] = (gx + b_ref[...]).reshape(T, Bp, 4 * Hp).astype(gx_sc.dtype)

    # ---- 2) Serial recurrence: only h @ W_hh^T + gate math per step. ----
    # Gate slab order is [i, f, o, g] (prepared in the wrapper): the three
    # sigmoid gates form one contiguous lane-aligned slab, the tanh gate is
    # the last slab.
    def step(t, carry):
        h, c = carry                                    # h: mm_dtype, c: f32
        gates = gx_sc[t].astype(jnp.float32) + jnp.dot(
            h, whh_ref[...], preferred_element_type=jnp.float32)
        # sigmoid(x) = 0.5 * tanh(0.5 * x) + 0.5  (one EUP op instead of
        # exp + reciprocal per sigmoid gate), applied to all three sigmoid
        # gates in a single contiguous (Bp, 3*Hp) op.
        sig = 0.5 * jnp.tanh(0.5 * gates[:, :3 * Hp]) + 0.5
        i_g = sig[:, 0 * Hp:1 * Hp]
        f_g = sig[:, 1 * Hp:2 * Hp]
        o_g = sig[:, 2 * Hp:3 * Hp]
        g_g = jnp.tanh(gates[:, 3 * Hp:4 * Hp])
        c = f_g * c + i_g * g_g
        h = (o_g * jnp.tanh(c)).astype(mm_dtype)        # cast fused here
        return (h, c)

    h0 = jnp.zeros((Bp, Hp), mm_dtype)
    c0 = jnp.zeros((Bp, Hp), jnp.float32)
    h_last, _ = jax.lax.fori_loop(0, T, step, (h0, c0), unroll=min(T, 8))

    # ---- 3) Fused Linear on the last hidden state (lane-dense output). ----
    out_ref[...] = (jnp.dot(h_last, wlin_ref[...],
                            preferred_element_type=jnp.float32)
                    + blin_ref[...]).astype(out_ref.dtype)


def lstm_model_forward(x, params, *, matmul_dtype=jnp.bfloat16):
    """x: [B, T, D] float32 (batch_first, like the PyTorch module)."""
    B, T, D = x.shape
    H = params["w_hh"].shape[1]        # w_hh: [4H, H]
    O = params["w_lin"].shape[0]       # w_lin: [O, H]

    Bp = _round_up(max(B, _SUBLANE), _SUBLANE)
    Hp = _round_up(max(H, _LANE), _LANE)
    Op = _round_up(max(O, _LANE), _LANE)

    exact = jnp.dtype(matmul_dtype) == jnp.dtype(jnp.float32)
    gx_dtype = jnp.float32 if exact else jnp.bfloat16

    # Time-major input; pad ONLY the batch (sublane) dim.  D stays unpadded.
    # (Padded hidden units see zero weights/bias -> their g-gate is 0 and
    # c/h stay exactly 0; padded batch rows are sliced off at the end.)
    x_tm = jnp.transpose(x, (1, 0, 2))                              # [T, B, D]
    x_p = _pad_to(x_tm, (T, Bp, D)).astype(matmul_dtype)            # [T, Bp, D]

    # Per-gate padded weight layout, gates reordered [i, f, g, o] -> [i, f, o, g]
    # so the three sigmoid gates are contiguous and the tanh gate is last.
    perm = jnp.array([0, 1, 3, 2])

    w_ih4 = params["w_ih"].reshape(4, H, D)[perm]
    wih_t = _pad_to(jnp.transpose(w_ih4, (2, 0, 1)), (D, 4, Hp))
    wih_t = wih_t.reshape(D, 4 * Hp).astype(matmul_dtype)           # [D, 4Hp]

    w_hh4 = params["w_hh"].reshape(4, H, H)[perm]
    whh_t = _pad_to(jnp.transpose(w_hh4, (2, 0, 1)), (Hp, 4, Hp))
    whh_t = whh_t.reshape(Hp, 4 * Hp).astype(matmul_dtype)          # [Hp, 4Hp]

    bias = _pad_to((params["b_ih"] + params["b_hh"]).reshape(4, H)[perm],
                   (4, Hp))
    bias = bias.reshape(1, 4 * Hp).astype(jnp.float32)              # [1, 4Hp]

    wlin_t = _pad_to(params["w_lin"].T, (Hp, Op)).astype(matmul_dtype)
    blin = _pad_to(params["b_lin"].reshape(1, O), (1, Op)).astype(jnp.float32)

    out = pl.pallas_call(
        _lstm_kernel,
        out_shape=jax.ShapeDtypeStruct((Bp, Op), jnp.float32),
        grid_spec=pltpu.PrefetchScalarGridSpec(
            num_scalar_prefetch=0,
            grid=(1,),                                  # single step: one DMA,
            in_specs=[                                  # no per-t pipeline cost
                pl.BlockSpec((T, Bp, D), lambda i: (0, 0, 0)),      # x
                pl.BlockSpec((D, 4 * Hp), lambda i: (0, 0)),        # W_ih^T
                pl.BlockSpec((Hp, 4 * Hp), lambda i: (0, 0)),       # W_hh^T
                pl.BlockSpec((1, 4 * Hp), lambda i: (0, 0)),        # bias
                pl.BlockSpec((Hp, Op), lambda i: (0, 0)),           # W_lin^T
                pl.BlockSpec((1, Op), lambda i: (0, 0)),            # b_lin
            ],
            out_specs=pl.BlockSpec((Bp, Op), lambda i: (0, 0)),
            scratch_shapes=[
                pltpu.VMEM((T, Bp, 4 * Hp), gx_dtype),   # gates_x slab
            ],
        ),
        compiler_params=pltpu.CompilerParams(
            dimension_semantics=("arbitrary",)),
    )(x_p, wih_t, whh_t, bias, wlin_t, blin)

    return out[:B, :O]


def init_params(key, input_size, hidden_size, output_size):
    """Deterministic init mimicking PyTorch's uniform(-1/sqrt(H), 1/sqrt(H))."""
    ks = jax.random.split(key, 6)
    s = 1.0 / jnp.sqrt(jnp.float32(hidden_size))
    u = lambda k, shape: jax.random.uniform(k, shape, jnp.float32, -s, s)
    return {
        "w_ih": u(ks[0], (4 * hidden_size, input_size)),
        "w_hh": u(ks[1], (4 * hidden_size, hidden_size)),
        "b_ih": u(ks[2], (4 * hidden_size,)),
        "b_hh": u(ks[3], (4 * hidden_size,)),
        "w_lin": u(ks[4], (output_size, hidden_size)),
        "b_lin": u(ks[5], (output_size,)),
    }


def _reference_forward(x, params):
    """Pure-JAX f32 reference of the PyTorch LSTMModel forward."""
    B, T, D = x.shape
    H = params["w_hh"].shape[1]
    wih_t = params["w_ih"].T
    whh_t = params["w_hh"].T
    bias = params["b_ih"] + params["b_hh"]

    def step(carry, x_t):
        h, c = carry
        gates = x_t @ wih_t + h @ whh_t + bias
        i = jax.nn.sigmoid(gates[:, 0 * H:1 * H])
        f = jax.nn.sigmoid(gates[:, 1 * H:2 * H])
        g = jnp.tanh(gates[:, 2 * H:3 * H])
        o = jax.nn.sigmoid(gates[:, 3 * H:4 * H])
        c = f * c + i * g
        h = o * jnp.tanh(c)
        return (h, c), None

    h0 = jnp.zeros((B, H), jnp.float32)
    c0 = jnp.zeros((B, H), jnp.float32)
    (h_last, _), _ = jax.lax.scan(step, (h0, c0), jnp.transpose(x, (1, 0, 2)))
    return h_last @ params["w_lin"].T + params["b_lin"]


if __name__ == "__main__":
    B, T, D = 2, 8, 8            # batch, seq len, input_size
    H, O = 128, 1                # hidden_layer_size (module default), output_size

    key = jax.random.PRNGKey(0)
    k_x, k_p = jax.random.split(key)
    x = jax.random.normal(k_x, (B, T, D), jnp.float32)
    params = init_params(k_p, D, H, O)

    ref = _reference_forward(x, params)

    # Exact-semantics check: f32 MXU operands, f32 gx slab.
    out_f32 = jax.block_until_ready(
        lstm_model_forward(x, params, matmul_dtype=jnp.float32))
    assert out_f32.shape == (B, O)
    assert jnp.allclose(out_f32, ref, atol=1e-3, rtol=1e-3), (out_f32, ref)

    # Fast path: bf16 MXU operands / bf16 h / bf16 gx slab, f32 accumulate,
    # f32 cell state and f32 activations.  (For long T, prefer the f32 path:
    # the bf16 h re-quantization compounds over timesteps.)
    out_bf16 = jax.block_until_ready(
        lstm_model_forward(x, params, matmul_dtype=jnp.bfloat16))
    assert out_bf16.shape == (B, O)
    assert jnp.allclose(out_bf16, ref, atol=5e-2, rtol=5e-2), (out_bf16, ref)

    print("KERNEL_OK")
</pallas_src>

<mosaic_0001>
module attributes {stable_mosaic.version = 11 : i64} {
  func.func @_lstm_kernel(%arg0: i32, %arg1: memref<8x8x8xf32, #tpu.memory_space<vmem>>, %arg2: memref<8x512xf32, #tpu.memory_space<vmem>>, %arg3: memref<128x512xf32, #tpu.memory_space<vmem>>, %arg4: memref<1x512xf32, #tpu.memory_space<vmem>>, %arg5: memref<128x128xf32, #tpu.memory_space<vmem>>, %arg6: memref<1x128xf32, #tpu.memory_space<vmem>>, %arg7: memref<8x128xf32, #tpu.memory_space<vmem>>, %arg8: memref<8x8x512xf32, #tpu.memory_space<vmem>>) attributes {dimension_semantics = [#tpu.dimension_semantics<arbitrary>], iteration_bounds = array<i64: 1>, scalar_prefetch = 0 : i64, scratch_operands = 1 : i64, tpu.core_type = #tpu.core_type<tc>, window_params = [{pipeline_mode = #tpu.pipeline_mode<synchronous>, transform_indices = @transform_0, window_bounds = array<i64: 8, 8, 8>}, {pipeline_mode = #tpu.pipeline_mode<synchronous>, transform_indices = @transform_1, window_bounds = array<i64: 8, 512>}, {pipeline_mode = #tpu.pipeline_mode<synchronous>, transform_indices = @transform_2, window_bounds = array<i64: 128, 512>}, {pipeline_mode = #tpu.pipeline_mode<synchronous>, transform_indices = @transform_3, window_bounds = array<i64: 1, 512>}, {pipeline_mode = #tpu.pipeline_mode<synchronous>, transform_indices = @transform_4, window_bounds = array<i64: 128, 128>}, {pipeline_mode = #tpu.pipeline_mode<synchronous>, transform_indices = @transform_5, window_bounds = array<i64: 1, 128>}, {pipeline_mode = #tpu.pipeline_mode<synchronous>, transform_indices = @transform_6, window_bounds = array<i64: 8, 128>}]} {
    %c0 = arith.constant 0 : index
    %c0_0 = arith.constant 0 : index
    %c0_1 = arith.constant 0 : index
    %0 = vector.load %arg1[%c0, %c0_0, %c0_1] : memref<8x8x8xf32, #tpu.memory_space<vmem>>, vector<8x8x8xf32>
    %1 = vector.shape_cast %0 : vector<8x8x8xf32> to vector<64x8xf32>
    %c0_2 = arith.constant 0 : index
    %c0_3 = arith.constant 0 : index
    %2 = vector.load %arg2[%c0_2, %c0_3] : memref<8x512xf32, #tpu.memory_space<vmem>>, vector<8x512xf32>
    %cst = arith.constant dense<0.000000e+00> : vector<64x512xf32>
    %3 = tpu.matmul %1, %2, %cst {dimension_numbers = #tpu.dot_dimension_numbers<[1], [0], [0], [1], [0, 0, 1, 1], [], []>} : vector<64x8xf32>, vector<8x512xf32>, vector<64x512xf32> -> vector<64x512xf32>
    %c0_4 = arith.constant 0 : index
    %c0_5 = arith.constant 0 : index
    %4 = vector.load %arg4[%c0_4, %c0_5] : memref<1x512xf32, #tpu.memory_space<vmem>>, vector<1x512xf32>
    %5 = vector.broadcast %4 : vector<1x512xf32> to vector<64x512xf32>
    %6 = arith.addf %3, %5 : vector<64x512xf32>
    %7 = vector.shape_cast %6 : vector<64x512xf32> to vector<8x8x512xf32>
    %c0_6 = arith.constant 0 : index
    %c0_7 = arith.constant 0 : index
    %c0_8 = arith.constant 0 : index
    %8 = vector.load %arg8[%c0_6, %c0_7, %c0_8] : memref<8x8x512xf32, #tpu.memory_space<vmem>>, vector<8x8x512xf32>
    tpu.vector_store %arg8[%c0_6, %c0_7, %c0_8], %7 {strides = array<i32>} : memref<8x8x512xf32, #tpu.memory_space<vmem>>, vector<8x8x512xf32>,
    %cst_9 = arith.constant 0.000000e+00 : f32
    %9 = vector.broadcast %cst_9 : f32 to vector<8x128xf32>
    %cst_10 = arith.constant 0.000000e+00 : f32
    %10 = vector.broadcast %cst_10 : f32 to vector<8x128xf32>
    %c0_i32 = arith.constant 0 : i32
    %11 = arith.index_cast %c0_i32 : i32 to index
    %c0_11 = arith.constant 0 : index
    %c0_12 = arith.constant 0 : index
    %12 = vector.load %arg8[%11, %c0_11, %c0_12] : memref<8x8x512xf32, #tpu.memory_space<vmem>>, vector<1x8x512xf32>
    %13 = vector.shape_cast %12 : vector<1x8x512xf32> to vector<8x512xf32>
    %c0_13 = arith.constant 0 : index
    %c0_14 = arith.constant 0 : index
    %14 = vector.load %arg3[%c0_13, %c0_14] : memref<128x512xf32, #tpu.memory_space<vmem>>, vector<128x512xf32>
    %cst_15 = arith.constant dense<0.000000e+00> : vector<8x512xf32>
    %15 = tpu.matmul %9, %14, %cst_15 {dimension_numbers = #tpu.dot_dimension_numbers<[1], [0], [0], [1], [0, 0, 1, 1], [], []>} : vector<8x128xf32>, vector<128x512xf32>, vector<8x512xf32> -> vector<8x512xf32>
    %16 = arith.addf %13, %15 : vector<8x512xf32>
    %17 = vector.extract_strided_slice %16 {offsets = [0, 0], sizes = [8, 384], strides = [1, 1]} : vector<8x512xf32> to vector<8x384xf32>
    %cst_16 = arith.constant 5.000000e-01 : f32
    %18 = vector.broadcast %cst_16 : f32 to vector<8x384xf32>
    %19 = arith.mulf %18, %17 : vector<8x384xf32>
    %20 = math.tanh %19 : vector<8x384xf32>
    %cst_17 = arith.constant 5.000000e-01 : f32
    %21 = vector.broadcast %cst_17 : f32 to vector<8x384xf32>
    %22 = arith.mulf %21, %20 : vector<8x384xf32>
    %cst_18 = arith.constant 5.000000e-01 : f32
    %23 = vector.broadcast %cst_18 : f32 to vector<8x384xf32>
    %24 = arith.addf %22, %23 : vector<8x384xf32>
    %25 = vector.extract_strided_slice %24 {offsets = [0, 0], sizes = [8, 128], strides = [1, 1]} : vector<8x384xf32> to vector<8x128xf32>
    %26 = vector.extract_strided_slice %24 {offsets = [0, 128], sizes = [8, 128], strides = [1, 1]} : vector<8x384xf32> to vector<8x128xf32>
    %27 = vector.extract_strided_slice %24 {offsets = [0, 256], sizes = [8, 128], strides = [1, 1]} : vector<8x384xf32> to vector<8x128xf32>
    %28 = vector.extract_strided_slice %16 {offsets = [0, 384], sizes = [8, 128], strides = [1, 1]} : vector<8x512xf32> to vector<8x128xf32>
    %29 = math.tanh %28 : vector<8x128xf32>
    %30 = arith.mulf %26, %10 : vector<8x128xf32>
    %31 = arith.mulf %25, %29 : vector<8x128xf32>
    %32 = arith.addf %30, %31 : vector<8x128xf32>
    %33 = math.tanh %32 : vector<8x128xf32>
    %34 = arith.mulf %27, %33 : vector<8x128xf32>
    %c1_i32 = arith.constant 1 : i32
    %35 = arith.index_cast %c1_i32 : i32 to index
    %c0_19 = arith.constant 0 : index
    %c0_20 = arith.constant 0 : index
    %36 = vector.load %arg8[%35, %c0_19, %c0_20] : memref<8x8x512xf32, #tpu.memory_space<vmem>>, vector<1x8x512xf32>
    %37 = vector.shape_cast %36 : vector<1x8x512xf32> to vector<8x512xf32>
    %c0_21 = arith.constant 0 : index
    %c0_22 = arith.constant 0 : index
    %38 = vector.load %arg3[%c0_21, %c0_22] : memref<128x512xf32, #tpu.memory_space<vmem>>, vector<128x512xf32>
    %cst_23 = arith.constant dense<0.000000e+00> : vector<8x512xf32>
    %39 = tpu.matmul %34, %38, %cst_23 {dimension_numbers = #tpu.dot_dimension_numbers<[1], [0], [0], [1], [0, 0, 1, 1], [], []>} : vector<8x128xf32>, vector<128x512xf32>, vector<8x512xf32> -> vector<8x512xf32>
    %40 = arith.addf %37, %39 : vector<8x512xf32>
    %41 = vector.extract_strided_slice %40 {offsets = [0, 0], sizes = [8, 384], strides = [1, 1]} : vector<8x512xf32> to vector<8x384xf32>
    %cst_24 = arith.constant 5.000000e-01 : f32
    %42 = vector.broadcast %cst_24 : f32 to vector<8x384xf32>
    %43 = arith.mulf %42, %41 : vector<8x384xf32>
    %44 = math.tanh %43 : vector<8x384xf32>
    %cst_25 = arith.constant 5.000000e-01 : f32
    %45 = vector.broadcast %cst_25 : f32 to vector<8x384xf32>
    %46 = arith.mulf %45, %44 : vector<8x384xf32>
    %cst_26 = arith.constant 5.000000e-01 : f32
    %47 = vector.broadcast %cst_26 : f32 to vector<8x384xf32>
    %48 = arith.addf %46, %47 : vector<8x384xf32>
    %49 = vector.extract_strided_slice %48 {offsets = [0, 0], sizes = [8, 128], strides = [1, 1]} : vector<8x384xf32> to vector<8x128xf32>
    %50 = vector.extract_strided_slice %48 {offsets = [0, 128], sizes = [8, 128], strides = [1, 1]} : vector<8x384xf32> to vector<8x128xf32>
    %51 = vector.extract_strided_slice %48 {offsets = [0, 256], sizes = [8, 128], strides = [1, 1]} : vector<8x384xf32> to vector<8x128xf32>
    %52 = vector.extract_strided_slice %40 {offsets = [0, 384], sizes = [8, 128], strides = [1, 1]} : vector<8x512xf32> to vector<8x128xf32>
    %53 = math.tanh %52 : vector<8x128xf32>
    %54 = arith.mulf %50, %32 : vector<8x128xf32>
    %55 = arith.mulf %49, %53 : vector<8x128xf32>
    %56 = arith.addf %54, %55 : vector<8x128xf32>
    %57 = math.tanh %56 : vector<8x128xf32>
    %58 = arith.mulf %51, %57 : vector<8x128xf32>
    %c2_i32 = arith.constant 2 : i32
    %59 = arith.index_cast %c2_i32 : i32 to index
    %c0_27 = arith.constant 0 : index
    %c0_28 = arith.constant 0 : index
    %60 = vector.load %arg8[%59, %c0_27, %c0_28] : memref<8x8x512xf32, #tpu.memory_space<vmem>>, vector<1x8x512xf32>
    %61 = vector.shape_cast %60 : vector<1x8x512xf32> to vector<8x512xf32>
    %c0_29 = arith.constant 0 : index
    %c0_30 = arith.constant 0 : index
    %62 = vector.load %arg3[%c0_29, %c0_30] : memref<128x512xf32, #tpu.memory_space<vmem>>, vector<128x512xf32>
    %cst_31 = arith.constant dense<0.000000e+00> : vector<8x512xf32>
    %63 = tpu.matmul %58, %62, %cst_31 {dimension_numbers = #tpu.dot_dimension_numbers<[1], [0], [0], [1], [0, 0, 1, 1], [], []>} : vector<8x128xf32>, vector<128x512xf32>, vector<8x512xf32> -> vector<8x512xf32>
    %64 = arith.addf %61, %63 : vector<8x512xf32>
    %65 = vector.extract_strided_slice %64 {offsets = [0, 0], sizes = [8, 384], strides = [1, 1]} : vector<8x512xf32> to vector<8x384xf32>
    %cst_32 = arith.constant 5.000000e-01 : f32
    %66 = vector.broadcast %cst_32 : f32 to vector<8x384xf32>
    %67 = arith.mulf %66, %65 : vector<8x384xf32>
    %68 = math.tanh %67 : vector<8x384xf32>
    %cst_33 = arith.constant 5.000000e-01 : f32
    %69 = vector.broadcast %cst_33 : f32 to vector<8x384xf32>
    %70 = arith.mulf %69, %68 : vector<8x384xf32>
    %cst_34 = arith.constant 5.000000e-01 : f32
    %71 = vector.broadcast %cst_34 : f32 to vector<8x384xf32>
    %72 = arith.addf %70, %71 : vector<8x384xf32>
    %73 = vector.extract_strided_slice %72 {offsets = [0, 0], sizes = [8, 128], strides = [1, 1]} : vector<8x384xf32> to vector<8x128xf32>
    %74 = vector.extract_strided_slice %72 {offsets = [0, 128], sizes = [8, 128], strides = [1, 1]} : vector<8x384xf32> to vector<8x128xf32>
    %75 = vector.extract_strided_slice %72 {offsets = [0, 256], sizes = [8, 128], strides = [1, 1]} : vector<8x384xf32> to vector<8x128xf32>
    %76 = vector.extract_strided_slice %64 {offsets = [0, 384], sizes = [8, 128], strides = [1, 1]} : vector<8x512xf32> to vector<8x128xf32>
    %77 = math.tanh %76 : vector<8x128xf32>
    %78 = arith.mulf %74, %56 : vector<8x128xf32>
    %79 = arith.mulf %73, %77 : vector<8x128xf32>
    %80 = arith.addf %78, %79 : vector<8x128xf32>
    %81 = math.tanh %80 : vector<8x128xf32>
    %82 = arith.mulf %75, %81 : vector<8x128xf32>
    %c3_i32 = arith.constant 3 : i32
    %83 = arith.index_cast %c3_i32 : i32 to index
    %c0_35 = arith.constant 0 : index
    %c0_36 = arith.constant 0 : index
    %84 = vector.load %arg8[%83, %c0_35, %c0_36] : memref<8x8x512xf32, #tpu.memory_space<vmem>>, vector<1x8x512xf32>
    %85 = vector.shape_cast %84 : vector<1x8x512xf32> to vector<8x512xf32>
    %c0_37 = arith.constant 0 : index
    %c0_38 = arith.constant 0 : index
    %86 = vector.load %arg3[%c0_37, %c0_38] : memref<128x512xf32, #tpu.memory_space<vmem>>, vector<128x512xf32>
    %cst_39 = arith.constant dense<0.000000e+00> : vector<8x512xf32>
    %87 = tpu.matmul %82, %86, %cst_39 {dimension_numbers = #tpu.dot_dimension_numbers<[1], [0], [0], [1], [0, 0, 1, 1], [], []>} : vector<8x128xf32>, vector<128x512xf32>, vector<8x512xf32> -> vector<8x512xf32>
    %88 = arith.addf %85, %87 : vector<8x512xf32>
    %89 = vector.extract_strided_slice %88 {offsets = [0, 0], sizes = [8, 384], strides = [1, 1]} : vector<8x512xf32> to vector<8x384xf32>
    %cst_40 = arith.constant 5.000000e-01 : f32
    %90 = vector.broadcast %cst_40 : f32 to vector<8x384xf32>
    %91 = arith.mulf %90, %89 : vector<8x384xf32>
    %92 = math.tanh %91 : vector<8x384xf32>
    %cst_41 = arith.constant 5.000000e-01 : f32
    %93 = vector.broadcast %cst_41 : f32 to vector<8x384xf32>
    %94 = arith.mulf %93, %92 : vector<8x384xf32>
    %cst_42 = arith.constant 5.000000e-01 : f32
    %95 = vector.broadcast %cst_42 : f32 to vector<8x384xf32>
    %96 = arith.addf %94, %95 : vector<8x384xf32>
    %97 = vector.extract_strided_slice %96 {offsets = [0, 0], sizes = [8, 128], strides = [1, 1]} : vector<8x384xf32> to vector<8x128xf32>
    %98 = vector.extract_strided_slice %96 {offsets = [0, 128], sizes = [8, 128], strides = [1, 1]} : vector<8x384xf32> to vector<8x128xf32>
    %99 = vector.extract_strided_slice %96 {offsets = [0, 256], sizes = [8, 128], strides = [1, 1]} : vector<8x384xf32> to vector<8x128xf32>
    %100 = vector.extract_strided_slice %88 {offsets = [0, 384], sizes = [8, 128], strides = [1, 1]} : vector<8x512xf32> to vector<8x128xf32>
    %101 = math.tanh %100 : vector<8x128xf32>
    %102 = arith.mulf %98, %80 : vector<8x128xf32>
    %103 = arith.mulf %97, %101 : vector<8x128xf32>
    %104 = arith.addf %102, %103 : vector<8x128xf32>
    %105 = math.tanh %104 : vector<8x128xf32>
    %106 = arith.mulf %99, %105 : vector<8x128xf32>
    %c4_i32 = arith.constant 4 : i32
    %107 = arith.index_cast %c4_i32 : i32 to index
    %c0_43 = arith.constant 0 : index
    %c0_44 = arith.constant 0 : index
    %108 = vector.load %arg8[%107, %c0_43, %c0_44] : memref<8x8x512xf32, #tpu.memory_space<vmem>>, vector<1x8x512xf32>
    %109 = vector.shape_cast %108 : vector<1x8x512xf32> to vector<8x512xf32>
    %c0_45 = arith.constant 0 : index
    %c0_46 = arith.constant 0 : index
    %110 = vector.load %arg3[%c0_45, %c0_46] : memref<128x512xf32, #tpu.memory_space<vmem>>, vector<128x512xf32>
    %cst_47 = arith.constant dense<0.000000e+00> : vector<8x512xf32>
    %111 = tpu.matmul %106, %110, %cst_47 {dimension_numbers = #tpu.dot_dimension_numbers<[1], [0], [0], [1], [0, 0, 1, 1], [], []>} : vector<8x128xf32>, vector<128x512xf32>, vector<8x512xf32> -> vector<8x512xf32>
    %112 = arith.addf %109, %111 : vector<8x512xf32>
    %113 = vector.extract_strided_slice %112 {offsets = [0, 0], sizes = [8, 384], strides = [1, 1]} : vector<8x512xf32> to vector<8x384xf32>
    %cst_48 = arith.constant 5.000000e-01 : f32
    %114 = vector.broadcast %cst_48 : f32 to vector<8x384xf32>
    %115 = arith.mulf %114, %113 : vector<8x384xf32>
    %116 = math.tanh %115 : vector<8x384xf32>
    %cst_49 = arith.constant 5.000000e-01 : f32
    %117 = vector.broadcast %cst_49 : f32 to vector<8x384xf32>
    %118 = arith.mulf %117, %116 : vector<8x384xf32>
    %cst_50 = arith.constant 5.000000e-01 : f32
    %119 = vector.broadcast %cst_50 : f32 to vector<8x384xf32>
    %120 = arith.addf %118, %119 : vector<8x384xf32>
    %121 = vector.extract_strided_slice %120 {offsets = [0, 0], sizes = [8, 128], strides = [1, 1]} : vector<8x384xf32> to vector<8x128xf32>
    %122 = vector.extract_strided_slice %120 {offsets = [0, 128], sizes = [8, 128], strides = [1, 1]} : vector<8x384xf32> to vector<8x128xf32>
    %123 = vector.extract_strided_slice %120 {offsets = [0, 256], sizes = [8, 128], strides = [1, 1]} : vector<8x384xf32> to vector<8x128xf32>
    %124 = vector.extract_strided_slice %112 {offsets = [0, 384], sizes = [8, 128], strides = [1, 1]} : vector<8x512xf32> to vector<8x128xf32>
    %125 = math.tanh %124 : vector<8x128xf32>
    %126 = arith.mulf %122, %104 : vector<8x128xf32>
    %127 = arith.mulf %121, %125 : vector<8x128xf32>
    %128 = arith.addf %126, %127 : vector<8x128xf32>
    %129 = math.tanh %128 : vector<8x128xf32>
    %130 = arith.mulf %123, %129 : vector<8x128xf32>
    %c5_i32 = arith.constant 5 : i32
    %131 = arith.index_cast %c5_i32 : i32 to index
    %c0_51 = arith.constant 0 : index
    %c0_52 = arith.constant 0 : index
    %132 = vector.load %arg8[%131, %c0_51, %c0_52] : memref<8x8x512xf32, #tpu.memory_space<vmem>>, vector<1x8x512xf32>
    %133 = vector.shape_cast %132 : vector<1x8x512xf32> to vector<8x512xf32>
    %c0_53 = arith.constant 0 : index
    %c0_54 = arith.constant 0 : index
    %134 = vector.load %arg3[%c0_53, %c0_54] : memref<128x512xf32, #tpu.memory_space<vmem>>, vector<128x512xf32>
    %cst_55 = arith.constant dense<0.000000e+00> : vector<8x512xf32>
    %135 = tpu.matmul %130, %134, %cst_55 {dimension_numbers = #tpu.dot_dimension_numbers<[1], [0], [0], [1], [0, 0, 1, 1], [], []>} : vector<8x128xf32>, vector<128x512xf32>, vector<8x512xf32> -> vector<8x512xf32>
    %136 = arith.addf %133, %135 : vector<8x512xf32>
    %137 = vector.extract_strided_slice %136 {offsets = [0, 0], sizes = [8, 384], strides = [1, 1]} : vector<8x512xf32> to vector<8x384xf32>
    %cst_56 = arith.constant 5.000000e-01 : f32
    %138 = vector.broadcast %cst_56 : f32 to vector<8x384xf32>
    %139 = arith.mulf %138, %137 : vector<8x384xf32>
    %140 = math.tanh %139 : vector<8x384xf32>
    %cst_57 = arith.constant 5.000000e-01 : f32
    %141 = vector.broadcast %cst_57 : f32 to vector<8x384xf32>
    %142 = arith.mulf %141, %140 : vector<8x384xf32>
    %cst_58 = arith.constant 5.000000e-01 : f32
    %143 = vector.broadcast %cst_58 : f32 to vector<8x384xf32>
    %144 = arith.addf %142, %143 : vector<8x384xf32>
    %145 = vector.extract_strided_slice %144 {offsets = [0, 0], sizes = [8, 128], strides = [1, 1]} : vector<8x384xf32> to vector<8x128xf32>
    %146 = vector.extract_strided_slice %144 {offsets = [0, 128], sizes = [8, 128], strides = [1, 1]} : vector<8x384xf32> to vector<8x128xf32>
    %147 = vector.extract_strided_slice %144 {offsets = [0, 256], sizes = [8, 128], strides = [1, 1]} : vector<8x384xf32> to vector<8x128xf32>
    %148 = vector.extract_strided_slice %136 {offsets = [0, 384], sizes = [8, 128], strides = [1, 1]} : vector<8x512xf32> to vector<8x128xf32>
    %149 = math.tanh %148 : vector<8x128xf32>
    %150 = arith.mulf %146, %128 : vector<8x128xf32>
    %151 = arith.mulf %145, %149 : vector<8x128xf32>
    %152 = arith.addf %150, %151 : vector<8x128xf32>
    %153 = math.tanh %152 : vector<8x128xf32>
    %154 = arith.mulf %147, %153 : vector<8x128xf32>
    %c6_i32 = arith.constant 6 : i32
    %155 = arith.index_cast %c6_i32 : i32 to index
    %c0_59 = arith.constant 0 : index
    %c0_60 = arith.constant 0 : index
    %156 = vector.load %arg8[%155, %c0_59, %c0_60] : memref<8x8x512xf32, #tpu.memory_space<vmem>>, vector<1x8x512xf32>
    %157 = vector.shape_cast %156 : vector<1x8x512xf32> to vector<8x512xf32>
    %c0_61 = arith.constant 0 : index
    %c0_62 = arith.constant 0 : index
    %158 = vector.load %arg3[%c0_61, %c0_62] : memref<128x512xf32, #tpu.memory_space<vmem>>, vector<128x512xf32>
    %cst_63 = arith.constant dense<0.000000e+00> : vector<8x512xf32>
    %159 = tpu.matmul %154, %158, %cst_63 {dimension_numbers = #tpu.dot_dimension_numbers<[1], [0], [0], [1], [0, 0, 1, 1], [], []>} : vector<8x128xf32>, vector<128x512xf32>, vector<8x512xf32> -> vector<8x512xf32>
    %160 = arith.addf %157, %159 : vector<8x512xf32>
    %161 = vector.extract_strided_slice %160 {offsets = [0, 0], sizes = [8, 384], strides = [1, 1]} : vector<8x512xf32> to vector<8x384xf32>
    %cst_64 = arith.constant 5.000000e-01 : f32
    %162 = vector.broadcast %cst_64 : f32 to vector<8x384xf32>
    %163 = arith.mulf %162, %161 : vector<8x384xf32>
    %164 = math.tanh %163 : vector<8x384xf32>
    %cst_65 = arith.constant 5.000000e-01 : f32
    %165 = vector.broadcast %cst_65 : f32 to vector<8x384xf32>
    %166 = arith.mulf %165, %164 : vector<8x384xf32>
    %cst_66 = arith.constant 5.000000e-01 : f32
    %167 = vector.broadcast %cst_66 : f32 to vector<8x384xf32>
    %168 = arith.addf %166, %167 : vector<8x384xf32>
    %169 = vector.extract_strided_slice %168 {offsets = [0, 0], sizes = [8, 128], strides = [1, 1]} : vector<8x384xf32> to vector<8x128xf32>
    %170 = vector.extract_strided_slice %168 {offsets = [0, 128], sizes = [8, 128], strides = [1, 1]} : vector<8x384xf32> to vector<8x128xf32>
    %171 = vector.extract_strided_slice %168 {offsets = [0, 256], sizes = [8, 128], strides = [1, 1]} : vector<8x384xf32> to vector<8x128xf32>
    %172 = vector.extract_strided_slice %160 {offsets = [0, 384], sizes = [8, 128], strides = [1, 1]} : vector<8x512xf32> to vector<8x128xf32>
    %173 = math.tanh %172 : vector<8x128xf32>
    %174 = arith.mulf %170, %152 : vector<8x128xf32>
    %175 = arith.mulf %169, %173 : vector<8x128xf32>
    %176 = arith.addf %174, %175 : vector<8x128xf32>
    %177 = math.tanh %176 : vector<8x128xf32>
    %178 = arith.mulf %171, %177 : vector<8x128xf32>
    %c7_i32 = arith.constant 7 : i32
    %179 = arith.index_cast %c7_i32 : i32 to index
    %c0_67 = arith.constant 0 : index
    %c0_68 = arith.constant 0 : index
    %180 = vector.load %arg8[%179, %c0_67, %c0_68] : memref<8x8x512xf32, #tpu.memory_space<vmem>>, vector<1x8x512xf32>
    %181 = vector.shape_cast %180 : vector<1x8x512xf32> to vector<8x512xf32>
    %c0_69 = arith.constant 0 : index
    %c0_70 = arith.constant 0 : index
    %182 = vector.load %arg3[%c0_69, %c0_70] : memref<128x512xf32, #tpu.memory_space<vmem>>, vector<128x512xf32>
    %cst_71 = arith.constant dense<0.000000e+00> : vector<8x512xf32>
    %183 = tpu.matmul %178, %182, %cst_71 {dimension_numbers = #tpu.dot_dimension_numbers<[1], [0], [0], [1], [0, 0, 1, 1], [], []>} : vector<8x128xf32>, vector<128x512xf32>, vector<8x512xf32> -> vector<8x512xf32>
    %184 = arith.addf %181, %183 : vector<8x512xf32>
    %185 = vector.extract_strided_slice %184 {offsets = [0, 0], sizes = [8, 384], strides = [1, 1]} : vector<8x512xf32> to vector<8x384xf32>
    %cst_72 = arith.constant 5.000000e-01 : f32
    %186 = vector.broadcast %cst_72 : f32 to vector<8x384xf32>
    %187 = arith.mulf %186, %185 : vector<8x384xf32>
    %188 = math.tanh %187 : vector<8x384xf32>
    %cst_73 = arith.constant 5.000000e-01 : f32
    %189 = vector.broadcast %cst_73 : f32 to vector<8x384xf32>
    %190 = arith.mulf %189, %188 : vector<8x384xf32>
    %cst_74 = arith.constant 5.000000e-01 : f32
    %191 = vector.broadcast %cst_74 : f32 to vector<8x384xf32>
    %192 = arith.addf %190, %191 : vector<8x384xf32>
    %193 = vector.extract_strided_slice %192 {offsets = [0, 0], sizes = [8, 128], strides = [1, 1]} : vector<8x384xf32> to vector<8x128xf32>
    %194 = vector.extract_strided_slice %192 {offsets = [0, 128], sizes = [8, 128], strides = [1, 1]} : vector<8x384xf32> to vector<8x128xf32>
    %195 = vector.extract_strided_slice %192 {offsets = [0, 256], sizes = [8, 128], strides = [1, 1]} : vector<8x384xf32> to vector<8x128xf32>
    %196 = vector.extract_strided_slice %184 {offsets = [0, 384], sizes = [8, 128], strides = [1, 1]} : vector<8x512xf32> to vector<8x128xf32>
    %197 = math.tanh %196 : vector<8x128xf32>
    %198 = arith.mulf %194, %176 : vector<8x128xf32>
    %199 = arith.mulf %193, %197 : vector<8x128xf32>
    %200 = arith.addf %198, %199 : vector<8x128xf32>
    %201 = math.tanh %200 : vector<8x128xf32>
    %202 = arith.mulf %195, %201 : vector<8x128xf32>
    %c8_i32 = arith.constant 8 : i32
    %c0_75 = arith.constant 0 : index
    %c0_76 = arith.constant 0 : index
    %203 = vector.load %arg5[%c0_75, %c0_76] : memref<128x128xf32, #tpu.memory_space<vmem>>, vector<128x128xf32>
    %cst_77 = arith.constant dense<0.000000e+00> : vector<8x128xf32>
    %204 = tpu.matmul %202, %203, %cst_77 {dimension_numbers = #tpu.dot_dimension_numbers<[1], [0], [0], [1], [0, 0, 1, 1], [], []>} : vector<8x128xf32>, vector<128x128xf32>, vector<8x128xf32> -> vector<8x128xf32>
    %c0_78 = arith.constant 0 : index
    %c0_79 = arith.constant 0 : index
    %205 = vector.load %arg6[%c0_78, %c0_79] : memref<1x128xf32, #tpu.memory_space<vmem>>, vector<1x128xf32>
    %206 = vector.broadcast %205 : vector<1x128xf32> to vector<8x128xf32>
    %207 = arith.addf %204, %206 : vector<8x128xf32>
    %c0_80 = arith.constant 0 : index
    %c0_81 = arith.constant 0 : index
    %208 = vector.load %arg7[%c0_80, %c0_81] : memref<8x128xf32, #tpu.memory_space<vmem>>, vector<8x128xf32>
    tpu.vector_store %arg7[%c0_80, %c0_81], %207 {strides = array<i32>} : memref<8x128xf32, #tpu.memory_space<vmem>>, vector<8x128xf32>,
    return
  }
  func.func @transform_0(%arg0: i32) -> (i32, i32, i32) {
    %c0_i32 = arith.constant 0 : i32
    %c0_i32_0 = arith.constant 0 : i32
    %c0_i32_1 = arith.constant 0 : i32
    %c0_i32_2 = arith.constant 0 : i32
    return %c0_i32, %c0_i32_0, %c0_i32_1 : i32, i32, i32
  }
  func.func @transform_1(%arg0: i32) -> (i32, i32) {
    %c0_i32 = arith.constant 0 : i32
    %c0_i32_0 = arith.constant 0 : i32
    %c0_i32_1 = arith.constant 0 : i32
    return %c0_i32, %c0_i32_0 : i32, i32
  }
  func.func @transform_2(%arg0: i32) -> (i32, i32) {
    %c0_i32 = arith.constant 0 : i32
    %c0_i32_0 = arith.constant 0 : i32
    %c0_i32_1 = arith.constant 0 : i32
    return %c0_i32, %c0_i32_0 : i32, i32
  }
  func.func @transform_3(%arg0: i32) -> (i32, i32) {
    %c0_i32 = arith.constant 0 : i32
    %c0_i32_0 = arith.constant 0 : i32
    %c0_i32_1 = arith.constant 0 : i32
    return %c0_i32, %c0_i32_0 : i32, i32
  }
  func.func @transform_4(%arg0: i32) -> (i32, i32) {
    %c0_i32 = arith.constant 0 : i32
    %c0_i32_0 = arith.constant 0 : i32
    %c0_i32_1 = arith.constant 0 : i32
    return %c0_i32, %c0_i32_0 : i32, i32
  }
  func.func @transform_5(%arg0: i32) -> (i32, i32) {
    %c0_i32 = arith.constant 0 : i32
    %c0_i32_0 = arith.constant 0 : i32
    %c0_i32_1 = arith.constant 0 : i32
    return %c0_i32, %c0_i32_0 : i32, i32
  }
  func.func @transform_6(%arg0: i32) -> (i32, i32) {
    %c0_i32 = arith.constant 0 : i32
    %c0_i32_0 = arith.constant 0 : i32
    %c0_i32_1 = arith.constant 0 : i32
    return %c0_i32, %c0_i32_0 : i32, i32
  }
}

</mosaic_0001>

<llo_original>
// kernel: tpu_custom_call.1
$region0: #{tpu_custom_call.1}
  #allocation0 [shape = 'u32[]', space=smem, size = 0x4, offset = 0x4, fixed_abs, tag = 'smem constant byte address 0x4 - core index']
  #allocation1 [shape = 'u32[144,128]{1,0:T(1,128)}', space=vmem, size = 0x12000, scoped, tag = 'internal scratch']
  #allocation2 [shape = 'f32[8,8,512]{2,1,0:T(8,128)}', space=vmem, size = 0x20000, scoped, tag = 'scratch operand']
  %s0 = inlined_call_operand.hbm [shape: f32[8,8,8], index: 0, kind: input, shape index: {}]
  %s1 = inlined_call_operand.hbm [shape: f32[8,512], index: 1, kind: input, shape index: {}]
  %s2 = inlined_call_operand.hbm [shape: f32[128,512], index: 2, kind: input, shape index: {}]
  %s3 = inlined_call_operand.vmem [shape: f32[1,512], index: 3, kind: input, shape index: {}]
  %s4 = inlined_call_operand.hbm [shape: f32[128,128], index: 4, kind: input, shape index: {}]
  %s5 = inlined_call_operand.vmem [shape: f32[1,128], index: 5, kind: input, shape index: {}]
  %s6 = inlined_call_operand.hbm [shape: f32[8,128], index: 6, kind: output, shape index: {}]
  %s7 = sld [smem:[#allocation0]]
  $region50: #{tpu_custom_call.1} parent=0
    _
  %s9 = ssub.s32 1, %s7
  %s10 = scalar_select 0, %s9, %s7
  $region1: #{tpu_custom_call.1} parent=0
    #allocation3 [shape = 'u8[32768]{0}', space=vmem, size = 0x8000, scoped, tag = 'input window, operand 0, single buffered']
    #allocation4 [shape = 's32[1]{0}', space=sflag, size = 0x4, scoped, tag = 'scoped memory for tpu_custom_call.1']
    #allocation5 [shape = 's32[1]{0}', space=sflag, size = 0x4, scoped, tag = 'scoped memory for tpu_custom_call.1']
    #allocation6 [shape = 'u8[16384]{0}', space=vmem, size = 0x4000, scoped, tag = 'input window, operand 1, single buffered']
    #allocation7 [shape = 's32[1]{0}', space=sflag, size = 0x4, scoped, tag = 'scoped memory for tpu_custom_call.1']
    #allocation8 [shape = 'u8[262144]{0}', space=vmem, size = 0x40000, scoped, tag = 'input window, operand 2, single buffered']
    #allocation9 [shape = 'u8[65536]{0}', space=vmem, size = 0x10000, scoped, tag = 'input window, operand 4, single buffered']
    #allocation10 [shape = 's32[1]{0}', space=sflag, size = 0x4, scoped, tag = 'scoped memory for tpu_custom_call.1']
    #allocation11 [shape = 'u8[4096]{0}', space=vmem, size = 0x1000, scoped, tag = 'output window, operand 0, single buffered']
    %11 = vsyncpa [#allocation4], 0
    %12 = vsyncpa [#allocation7], 0
    %13 = vsyncpa [#allocation10], 0
    %14 = vsyncpa [#allocation5], 0
    // Predicated region
    $region2: #{tpu_custom_call.1} parent=1 // pred_check
      _
    $region3: #{tpu_custom_call.1} parent=1 // pred_check_branch
      %16 = sbr.rel (0) target = $region5
    $region4: #{tpu_custom_call.1} parent=1 // pred_region
      %s18 = ssub.s32 1024, 1024
      %19 = vsyncadd [#allocation4], %s18
      %s20 = sshll.u32 [#allocation3], 4
      %s21 = int_to_ptr.vmem [resolvable:$true] %s20
      %26 = dma.hbm_to_vmem [thread:$0]  %s0, 1024, %s21, [#allocation4], 128, 128, 8
    $region5: #{tpu_custom_call.1} parent=1 // pred_fallthru
      _
    // Predicated region
    $region6: #{tpu_custom_call.1} parent=1 // pred_check
      _
    $region7: #{tpu_custom_call.1} parent=1 // pred_check_branch
      %28 = sbr.rel (0) target = $region9
    $region8: #{tpu_custom_call.1} parent=1 // pred_region
      %s30 = ssub.s32 512, 512
      %31 = vsyncadd [#allocation7], %s30
      %s33 = sshll.u32 [#allocation6], 4
      %s34 = int_to_ptr.vmem [resolvable:$true] %s33
      %36 = dma.hbm_to_vmem [thread:$0]  %s1, 512, %s34, [#allocation7]
    $region9: #{tpu_custom_call.1} parent=1 // pred_fallthru
      _
    // Predicated region
    $region10: #{tpu_custom_call.1} parent=1 // pred_check
      _
    $region11: #{tpu_custom_call.1} parent=1 // pred_check_branch
      %38 = sbr.rel (0) target = $region13
    $region12: #{tpu_custom_call.1} parent=1 // pred_region
      %s40 = ssub.s32 8192, 8192
      %41 = vsyncadd [#allocation7], %s40
      %s42 = sshll.u32 [#allocation8], 4
      %s43 = int_to_ptr.vmem [resolvable:$true] %s42
      %48 = dma.hbm_to_vmem [thread:$0]  %s2, 8192, %s43, [#allocation7], 512, 512, 32
    $region13: #{tpu_custom_call.1} parent=1 // pred_fallthru
      _
    // Predicated region
    $region14: #{tpu_custom_call.1} parent=1 // pred_check
      _
    $region15: #{tpu_custom_call.1} parent=1 // pred_check_branch
      %50 = sbr.rel (0) target = $region17
    $region16: #{tpu_custom_call.1} parent=1 // pred_region
      _
    $region17: #{tpu_custom_call.1} parent=1 // pred_fallthru
      _
    // Predicated region
    $region18: #{tpu_custom_call.1} parent=1 // pred_check
      _
    $region19: #{tpu_custom_call.1} parent=1 // pred_check_branch
      %52 = sbr.rel (0) target = $region21
    $region20: #{tpu_custom_call.1} parent=1 // pred_region
      %s54 = ssub.s32 2048, 2048
      %55 = vsyncadd [#allocation10], %s54
      %s56 = sshll.u32 [#allocation9], 4
      %s57 = int_to_ptr.vmem [resolvable:$true] %s56
      %62 = dma.hbm_to_vmem [thread:$0]  %s4, 2048, %s57, [#allocation10], 128, 128, 8
    $region21: #{tpu_custom_call.1} parent=1 // pred_fallthru
      _
    // Predicated region
    $region22: #{tpu_custom_call.1} parent=1 // pred_check
      _
    $region23: #{tpu_custom_call.1} parent=1 // pred_check_branch
      %64 = sbr.rel (0) target = $region25
    $region24: #{tpu_custom_call.1} parent=1 // pred_region
      _
    $region25: #{tpu_custom_call.1} parent=1 // pred_fallthru
      _
    // Predicated region
    $region26: #{tpu_custom_call.1} parent=1 // pred_check
      _
    $region27: #{tpu_custom_call.1} parent=1 // pred_check_branch
      %66 = sbr.rel (0) target = $region29
    $region28: #{tpu_custom_call.1} parent=1 // pred_region
      %67 = dma.done [#allocation4], 1024
    $region29: #{tpu_custom_call.1} parent=1 // pred_fallthru
      _
    // Predicated region
    $region30: #{tpu_custom_call.1} parent=1 // pred_check
      _
    $region31: #{tpu_custom_call.1} parent=1 // pred_check_branch
      %69 = sbr.rel (0) target = $region33
    $region32: #{tpu_custom_call.1} parent=1 // pred_region
      %70 = dma.done [#allocation7], 512
    $region33: #{tpu_custom_call.1} parent=1 // pred_fallthru
      _
    // Predicated region
    $region34: #{tpu_custom_call.1} parent=1 // pred_check
      _
    $region35: #{tpu_custom_call.1} parent=1 // pred_check_branch
      %72 = sbr.rel (0) target = $region37
    $region36: #{tpu_custom_call.1} parent=1 // pred_region
      %73 = dma.done [#allocation7], 8192
    $region37: #{tpu_custom_call.1} parent=1 // pred_fallthru
      _
    // Predicated region
    $region38: #{tpu_custom_call.1} parent=1 // pred_check
      _
    $region39: #{tpu_custom_call.1} parent=1 // pred_check_branch
      %75 = sbr.rel (0) target = $region41
    $region40: #{tpu_custom_call.1} parent=1 // pred_region
      %76 = dma.done [#allocation10], 2048
    $region41: #{tpu_custom_call.1} parent=1 // pred_fallthru
      _
    %v77 = vld [vmem:[#allocation3] sm:$0xff]
    %v78 = vld [vmem:[#allocation3 + $0x8] sm:$0xff]
    %v79 = vld [vmem:[#allocation3 + $0x10] sm:$0xff]
    %v80 = vld [vmem:[#allocation3 + $0x18] sm:$0xff]
    %v81 = vld [vmem:[#allocation3 + $0x20] sm:$0xff]
    %v82 = vld [vmem:[#allocation3 + $0x28] sm:$0xff]
    %v83 = vld [vmem:[#allocation3 + $0x30] sm:$0xff]
    %v84 = vld [vmem:[#allocation3 + $0x38] sm:$0xff]
    %v85 = vld [vmem:[#allocation6] sm:$0xff]
    %v86 = vld [vmem:[#allocation6 + $0x8] sm:$0xff]
    %v87 = vld [vmem:[#allocation6 + $0x10] sm:$0xff]
    %v88 = vld [vmem:[#allocation6 + $0x18] sm:$0xff]
    %v89 = vld [vmem:[%s3] sm:$0xf]
    %v91 = vlaneseq
    %v92 = vshrl.u32 %v91, 7
    %v93 = vsub.s32 0, %v92
    %v94 = vrot.slane %v89, %v93
    %v95 = vlaneseq
    %v96 = vshrl.u32 %v95, 7
    %v97 = vsub.s32 1, %v96
    %v98 = vrot.slane %v89, %v97
    %v99 = vlaneseq
    %v100 = vshrl.u32 %v99, 7
    %v101 = vsub.s32 2, %v100
    %v102 = vrot.slane %v89, %v101
    %v103 = vlaneseq
    %v104 = vshrl.u32 %v103, 7
    %v105 = vsub.s32 3, %v104
    %v106 = vrot.slane %v89, %v105
    %vm111 = vcmask 64512
    %v113 = vsel %vm111, %v77, 0
    %v116 = vsel %vm111, %v78, 0
    %v119 = vsel %vm111, %v79, 0
    %v122 = vsel %vm111, %v80, 0
    %v125 = vsel %vm111, %v81, 0
    %v128 = vsel %vm111, %v82, 0
    %v131 = vsel %vm111, %v83, 0
    %v134 = vsel %vm111, %v84, 0
    %136 = vmatprep.subr.mxu0 %v86
    %137 = vmatpush1.msra.mxu0 %v85
    %138 = vmatprep.subr.mxu0 0.0
    %139 = vmatpush1.msra.mxu0 0.0
    %140 = vmatprep.subr.mxu0 0.0
    %141 = vmatpush1.msra.mxu0 0.0
    %142 = vmatprep.subr.mxu0 0.0
    %143 = vmatpush1.msra.mxu0 0.0
    %144 = vmatprep.subr.mxu0 0.0
    %145 = vmatpush1.msra.mxu0 0.0
    %146 = vmatprep.subr.mxu0 0.0
    %147 = vmatpush1.msra.mxu0 0.0
    %148 = vmatprep.subr.mxu0 0.0
    %149 = vmatpush1.msra.mxu0 0.0
    %150 = vmatprep.subr.mxu0 0.0
    %151 = vmatpush1.msra.mxu0 0.0
    %152 = vmatprep.subr.mxu0 0.0
    %153 = vmatpush1.msra.mxu0 0.0
    %154 = vmatprep.subr.mxu0 0.0
    %155 = vmatpush1.msra.mxu0 0.0
    %156 = vmatprep.subr.mxu0 0.0
    %157 = vmatpush1.msra.mxu0 0.0
    %158 = vmatprep.subr.mxu0 0.0
    %159 = vmatpush1.msra.mxu0 0.0
    %160 = vmatprep.subr.mxu0 0.0
    %161 = vmatpush1.msra.mxu0 0.0
    %162 = vmatprep.subr.mxu0 0.0
    %163 = vmatpush1.msra.mxu0 0.0
    %164 = vmatprep.subr.mxu0 0.0
    %165 = vmatpush1.msra.mxu0 0.0
    %166 = vmatprep.subr.mxu0 0.0
    %167 = vmatpush1.msra.mxu0 0.0
    %168 = vmatprep.subr.mxu0 0.0
    %169 = vmatpush1.msra.mxu0 0.0
    %170 = vmatprep.subr.mxu0 0.0
    %171 = vmatpush1.msra.mxu0 0.0
    %172 = vmatprep.subr.mxu0 0.0
    %173 = vmatpush1.msra.mxu0 0.0
    %174 = vmatprep.subr.mxu0 0.0
    %175 = vmatpush1.msra.mxu0 0.0
    %176 = vmatprep.subr.mxu0 0.0
    %177 = vmatpush1.msra.mxu0 0.0
    %178 = vmatprep.subr.mxu0 0.0
    %179 = vmatpush1.msra.mxu0 0.0
    %180 = vmatprep.subr.mxu0 0.0
    %181 = vmatpush1.msra.mxu0 0.0
    %182 = vmatprep.subr.mxu0 0.0
    %183 = vmatpush1.msra.mxu0 0.0
    %184 = vmatprep.subr.mxu0 0.0
    %185 = vmatpush1.msra.mxu0 0.0
    %186 = vmatprep.subr.mxu0 0.0
    %187 = vmatpush1.msra.mxu0 0.0
    %188 = vmatprep.subr.mxu0 0.0
    %189 = vmatpush1.msra.mxu0 0.0
    %190 = vmatprep.subr.mxu0 0.0
    %191 = vmatpush1.msra.mxu0 0.0
    %192 = vmatprep.subr.mxu0 0.0
    %193 = vmatpush1.msra.mxu0 0.0
    %194 = vmatprep.subr.mxu0 0.0
    %195 = vmatpush1.msra.mxu0 0.0
    %196 = vmatprep.subr.mxu0 0.0
    %197 = vmatpush1.msra.mxu0 0.0
    %198 = vmatprep.subr.mxu0 0.0
    %199 = vmatpush1.msra.mxu0 0.0
    %200 = vmatprep.mubr.f32.mxu0 0.0
    %201 = vmatmul.mubr.f32.gmra.mrb[0].mxu0 %v113
    %v202 = vpop.f32.mrb[0].mxu0
    %v203 = vadd.f32 %v94, %v202
    %v204 = vpop.f32.mrb[0].mxu0
    %v205 = vadd.f32 %v98, %v204
    %206 = vmatprep.mubr.f32.mxu0 0.0
    %207 = vmatmul.mubr.f32.gmra.mrb[0].mxu0 %v116
    %v208 = vpop.f32.mrb[0].mxu0
    %v209 = vadd.f32 %v94, %v208
    %v210 = vpop.f32.mrb[0].mxu0
    %v211 = vadd.f32 %v98, %v210
    %212 = vmatprep.mubr.f32.mxu0 0.0
    %213 = vmatmul.mubr.f32.gmra.mrb[0].mxu0 %v119
    %v214 = vpop.f32.mrb[0].mxu0
    %v215 = vadd.f32 %v94, %v214
    %v216 = vpop.f32.mrb[0].mxu0
    %v217 = vadd.f32 %v98, %v216
    %218 = vmatprep.mubr.f32.mxu0 0.0
    %219 = vmatmul.mubr.f32.gmra.mrb[0].mxu0 %v122
    %v220 = vpop.f32.mrb[0].mxu0
    %v221 = vadd.f32 %v94, %v220
    %v222 = vpop.f32.mrb[0].mxu0
    %v223 = vadd.f32 %v98, %v222
    %224 = vmatprep.mubr.f32.mxu0 0.0
    %225 = vmatmul.mubr.f32.gmra.mrb[0].mxu0 %v125
    %v226 = vpop.f32.mrb[0].mxu0
    %v227 = vadd.f32 %v94, %v226
    %v228 = vpop.f32.mrb[0].mxu0
    %v229 = vadd.f32 %v98, %v228
    %230 = vmatprep.mubr.f32.mxu0 0.0
    %231 = vmatmul.mubr.f32.gmra.mrb[0].mxu0 %v128
    %v232 = vpop.f32.mrb[0].mxu0
    %v233 = vadd.f32 %v94, %v232
    %v234 = vpop.f32.mrb[0].mxu0
    %v235 = vadd.f32 %v98, %v234
    %236 = vmatprep.mubr.f32.mxu0 0.0
    %237 = vmatmul.mubr.f32.gmra.mrb[0].mxu0 %v131
    %v238 = vpop.f32.mrb[0].mxu0
    %v239 = vadd.f32 %v94, %v238
    %v240 = vpop.f32.mrb[0].mxu0
    %v241 = vadd.f32 %v98, %v240
    %242 = vmatprep.mubr.f32.mxu0 0.0
    %243 = vmatmul.mubr.f32.gmra.mrb[0].mxu0 %v134
    %v244 = vpop.f32.mrb[0].mxu0
    %v245 = vadd.f32 %v94, %v244
    %v246 = vpop.f32.mrb[0].mxu0
    %v247 = vadd.f32 %v98, %v246
    %248 = vdwg.mxu0
    %249 = vmatprep.subr.mxu0 %v88
    %250 = vmatpush1.msra.mxu0 %v87
    %251 = vmatprep.subr.mxu0 0.0
    %252 = vmatpush1.msra.mxu0 0.0
    %253 = vmatprep.subr.mxu0 0.0
    %254 = vmatpush1.msra.mxu0 0.0
    %255 = vmatprep.subr.mxu0 0.0
    %256 = vmatpush1.msra.mxu0 0.0
    %257 = vmatprep.subr.mxu0 0.0
    %258 = vmatpush1.msra.mxu0 0.0
    %259 = vmatprep.subr.mxu0 0.0
    %260 = vmatpush1.msra.mxu0 0.0
    %261 = vmatprep.subr.mxu0 0.0
    %262 = vmatpush1.msra.mxu0 0.0
    %263 = vmatprep.subr.mxu0 0.0
    %264 = vmatpush1.msra.mxu0 0.0
    %265 = vmatprep.subr.mxu0 0.0
    %266 = vmatpush1.msra.mxu0 0.0
    %267 = vmatprep.subr.mxu0 0.0
    %268 = vmatpush1.msra.mxu0 0.0
    %269 = vmatprep.subr.mxu0 0.0
    %270 = vmatpush1.msra.mxu0 0.0
    %271 = vmatprep.subr.mxu0 0.0
    %272 = vmatpush1.msra.mxu0 0.0
    %273 = vmatprep.subr.mxu0 0.0
    %274 = vmatpush1.msra.mxu0 0.0
    %275 = vmatprep.subr.mxu0 0.0
    %276 = vmatpush1.msra.mxu0 0.0
    %277 = vmatprep.subr.mxu0 0.0
    %278 = vmatpush1.msra.mxu0 0.0
    %279 = vmatprep.subr.mxu0 0.0
    %280 = vmatpush1.msra.mxu0 0.0
    %281 = vmatprep.subr.mxu0 0.0
    %282 = vmatpush1.msra.mxu0 0.0
    %283 = vmatprep.subr.mxu0 0.0
    %284 = vmatpush1.msra.mxu0 0.0
    %285 = vmatprep.subr.mxu0 0.0
    %286 = vmatpush1.msra.mxu0 0.0
    %287 = vmatprep.subr.mxu0 0.0
    %288 = vmatpush1.msra.mxu0 0.0
    %289 = vmatprep.subr.mxu0 0.0
    %290 = vmatpush1.msra.mxu0 0.0
    %291 = vmatprep.subr.mxu0 0.0
    %292 = vmatpush1.msra.mxu0 0.0
    %293 = vmatprep.subr.mxu0 0.0
    %294 = vmatpush1.msra.mxu0 0.0
    %295 = vmatprep.subr.mxu0 0.0
    %296 = vmatpush1.msra.mxu0 0.0
    %297 = vmatprep.subr.mxu0 0.0
    %298 = vmatpush1.msra.mxu0 0.0
    %299 = vmatprep.subr.mxu0 0.0
    %300 = vmatpush1.msra.mxu0 0.0
    %301 = vmatprep.subr.mxu0 0.0
    %302 = vmatpush1.msra.mxu0 0.0
    %303 = vmatprep.subr.mxu0 0.0
    %304 = vmatpush1.msra.mxu0 0.0
    %305 = vmatprep.subr.mxu0 0.0
    %306 = vmatpush1.msra.mxu0 0.0
    %307 = vmatprep.subr.mxu0 0.0
    %308 = vmatpush1.msra.mxu0 0.0
    %309 = vmatprep.subr.mxu0 0.0
    %310 = vmatpush1.msra.mxu0 0.0
    %311 = vmatprep.subr.mxu0 0.0
    %312 = vmatpush1.msra.mxu0 0.0
    %313 = vmatprep.mubr.f32.mxu0 0.0
    %314 = vmatmul.mubr.f32.gmra.mrb[0].mxu0 %v113
    %v315 = vpop.f32.mrb[0].mxu0
    %v316 = vadd.f32 %v102, %v315
    %v317 = vpop.f32.mrb[0].mxu0
    %v318 = vadd.f32 %v106, %v317
    %319 = vmatprep.mubr.f32.mxu0 0.0
    %320 = vmatmul.mubr.f32.gmra.mrb[0].mxu0 %v116
    %v321 = vpop.f32.mrb[0].mxu0
    %v322 = vadd.f32 %v102, %v321
    %v323 = vpop.f32.mrb[0].mxu0
    %v324 = vadd.f32 %v106, %v323
    %325 = vmatprep.mubr.f32.mxu0 0.0
    %326 = vmatmul.mubr.f32.gmra.mrb[0].mxu0 %v119
    %v327 = vpop.f32.mrb[0].mxu0
    %v328 = vadd.f32 %v102, %v327
    %v329 = vpop.f32.mrb[0].mxu0
    %v330 = vadd.f32 %v106, %v329
    %331 = vmatprep.mubr.f32.mxu0 0.0
    %332 = vmatmul.mubr.f32.gmra.mrb[0].mxu0 %v122
    %v333 = vpop.f32.mrb[0].mxu0
    %v334 = vadd.f32 %v102, %v333
    %v335 = vpop.f32.mrb[0].mxu0
    %v336 = vadd.f32 %v106, %v335
    %337 = vmatprep.mubr.f32.mxu0 0.0
    %338 = vmatmul.mubr.f32.gmra.mrb[0].mxu0 %v125
    %v339 = vpop.f32.mrb[0].mxu0
    %v340 = vadd.f32 %v102, %v339
    %v341 = vpop.f32.mrb[0].mxu0
    %v342 = vadd.f32 %v106, %v341
    %343 = vmatprep.mubr.f32.mxu0 0.0
    %344 = vmatmul.mubr.f32.gmra.mrb[0].mxu0 %v128
    %v345 = vpop.f32.mrb[0].mxu0
    %v346 = vadd.f32 %v102, %v345
    %v347 = vpop.f32.mrb[0].mxu0
    %v348 = vadd.f32 %v106, %v347
    %349 = vmatprep.mubr.f32.mxu0 0.0
    %350 = vmatmul.mubr.f32.gmra.mrb[0].mxu0 %v131
    %v351 = vpop.f32.mrb[0].mxu0
    %v352 = vadd.f32 %v102, %v351
    %v353 = vpop.f32.mrb[0].mxu0
    %v354 = vadd.f32 %v106, %v353
    %355 = vmatprep.mubr.f32.mxu0 0.0
    %356 = vmatmul.mubr.f32.gmra.mrb[0].mxu0 %v134
    %v357 = vpop.f32.mrb[0].mxu0
    %v358 = vadd.f32 %v102, %v357
    %v359 = vpop.f32.mrb[0].mxu0
    %v360 = vadd.f32 %v106, %v359
    %361 = vdwg.mxu0
    %362 = vst [vmem:[#allocation2] sm:$0xff] %v203
    %363 = vst [vmem:[#allocation2 + $0x8] sm:$0xff] %v205
    %364 = vst [vmem:[#allocation2 + $0x10] sm:$0xff] %v316
    %365 = vst [vmem:[#allocation2 + $0x18] sm:$0xff] %v318
    %366 = vst [vmem:[#allocation2 + $0x20] sm:$0xff] %v209
    %367 = vst [vmem:[#allocation2 + $0x28] sm:$0xff] %v211
    %368 = vst [vmem:[#allocation2 + $0x30] sm:$0xff] %v322
    %369 = vst [vmem:[#allocation2 + $0x38] sm:$0xff] %v324
    %370 = vst [vmem:[#allocation2 + $0x40] sm:$0xff] %v215
    %371 = vst [vmem:[#allocation2 + $0x48] sm:$0xff] %v217
    %372 = vst [vmem:[#allocation2 + $0x50] sm:$0xff] %v328
    %373 = vst [vmem:[#allocation2 + $0x58] sm:$0xff] %v330
    %374 = vst [vmem:[#allocation2 + $0x60] sm:$0xff] %v221
    %375 = vst [vmem:[#allocation2 + $0x68] sm:$0xff] %v223
    %376 = vst [vmem:[#allocation2 + $0x70] sm:$0xff] %v334
    %377 = vst [vmem:[#allocation2 + $0x78] sm:$0xff] %v336
    %378 = vst [vmem:[#allocation2 + $0x80] sm:$0xff] %v227
    %379 = vst [vmem:[#allocation2 + $0x88] sm:$0xff] %v229
    %380 = vst [vmem:[#allocation2 + $0x90] sm:$0xff] %v340
    %381 = vst [vmem:[#allocation2 + $0x98] sm:$0xff] %v342
    %382 = vst [vmem:[#allocation2 + $0xa0] sm:$0xff] %v233
    %383 = vst [vmem:[#allocation2 + $0xa8] sm:$0xff] %v235
    %384 = vst [vmem:[#allocation2 + $0xb0] sm:$0xff] %v346
    %385 = vst [vmem:[#allocation2 + $0xb8] sm:$0xff] %v348
    %386 = vst [vmem:[#allocation2 + $0xc0] sm:$0xff] %v239
    %387 = vst [vmem:[#allocation2 + $0xc8] sm:$0xff] %v241
    %388 = vst [vmem:[#allocation2 + $0xd0] sm:$0xff] %v352
    %389 = vst [vmem:[#allocation2 + $0xd8] sm:$0xff] %v354
    %390 = vst [vmem:[#allocation2 + $0xe0] sm:$0xff] %v245
    %391 = vst [vmem:[#allocation2 + $0xe8] sm:$0xff] %v247
    %392 = vst [vmem:[#allocation2 + $0xf0] sm:$0xff] %v358
    %393 = vst [vmem:[#allocation2 + $0xf8] sm:$0xff] %v360
    %v394 = vld [vmem:[#allocation2] sm:$0xff]
    %v395 = vld [vmem:[#allocation2 + $0x8] sm:$0xff]
    %v396 = vld [vmem:[#allocation2 + $0x10] sm:$0xff]
    %v397 = vld [vmem:[#allocation2 + $0x18] sm:$0xff]
    %v398 = vld [vmem:[#allocation8] sm:$0xff]
    %v399 = vld [vmem:[#allocation8 + $0x8] sm:$0xff]
    %v400 = vld [vmem:[#allocation8 + $0x10] sm:$0xff]
    %v401 = vld [vmem:[#allocation8 + $0x18] sm:$0xff]
    %v402 = vld [vmem:[#allocation8 + $0x20] sm:$0xff]
    %v403 = vld [vmem:[#allocation8 + $0x28] sm:$0xff]
    %v404 = vld [vmem:[#allocation8 + $0x30] sm:$0xff]
    %v405 = vld [vmem:[#allocation8 + $0x38] sm:$0xff]
    %v406 = vld [vmem:[#allocation8 + $0x40] sm:$0xff]
    %v407 = vld [vmem:[#allocation8 + $0x48] sm:$0xff]
    %v408 = vld [vmem:[#allocation8 + $0x50] sm:$0xff]
    %v409 = vld [vmem:[#allocation8 + $0x58] sm:$0xff]
    %v410 = vld [vmem:[#allocation8 + $0x60] sm:$0xff]
    %v411 = vld [vmem:[#allocation8 + $0x68] sm:$0xff]
    %v412 = vld [vmem:[#allocation8 + $0x70] sm:$0xff]
    %v413 = vld [vmem:[#allocation8 + $0x78] sm:$0xff]
    %v414 = vld [vmem:[#allocation8 + $0x80] sm:$0xff]
    %v415 = vld [vmem:[#allocation8 + $0x88] sm:$0xff]
    %v416 = vld [vmem:[#allocation8 + $0x90] sm:$0xff]
    %v417 = vld [vmem:[#allocation8 + $0x98] sm:$0xff]
    %v418 = vld [vmem:[#allocation8 + $0xa0] sm:$0xff]
    %v419 = vld [vmem:[#allocation8 + $0xa8] sm:$0xff]
    %v420 = vld [vmem:[#allocation8 + $0xb0] sm:$0xff]
    %v421 = vld [vmem:[#allocation8 + $0xb8] sm:$0xff]
    %v422 = vld [vmem:[#allocation8 + $0xc0] sm:$0xff]
    %v423 = vld [vmem:[#allocation8 + $0xc8] sm:$0xff]
    %v424 = vld [vmem:[#allocation8 + $0xd0] sm:$0xff]
    %v425 = vld [vmem:[#allocation8 + $0xd8] sm:$0xff]
    %v426 = vld [vmem:[#allocation8 + $0xe0] sm:$0xff]
    %v427 = vld [vmem:[#allocation8 + $0xe8] sm:$0xff]
    %v428 = vld [vmem:[#allocation8 + $0xf0] sm:$0xff]
    %v429 = vld [vmem:[#allocation8 + $0xf8] sm:$0xff]
    %v430 = vld [vmem:[#allocation8 + $0x100] sm:$0xff]
    %v431 = vld [vmem:[#allocation8 + $0x108] sm:$0xff]
    %v432 = vld [vmem:[#allocation8 + $0x110] sm:$0xff]
    %v433 = vld [vmem:[#allocation8 + $0x118] sm:$0xff]
    %v434 = vld [vmem:[#allocation8 + $0x120] sm:$0xff]
    %v435 = vld [vmem:[#allocation8 + $0x128] sm:$0xff]
    %v436 = vld [vmem:[#allocation8 + $0x130] sm:$0xff]
    %v437 = vld [vmem:[#allocation8 + $0x138] sm:$0xff]
    %v438 = vld [vmem:[#allocation8 + $0x140] sm:$0xff]
    %v439 = vld [vmem:[#allocation8 + $0x148] sm:$0xff]
    %v440 = vld [vmem:[#allocation8 + $0x150] sm:$0xff]
    %v441 = vld [vmem:[#allocation8 + $0x158] sm:$0xff]
    %v442 = vld [vmem:[#allocation8 + $0x160] sm:$0xff]
    %v443 = vld [vmem:[#allocation8 + $0x168] sm:$0xff]
    %v444 = vld [vmem:[#allocation8 + $0x170] sm:$0xff]
    %v445 = vld [vmem:[#allocation8 + $0x178] sm:$0xff]
    %v446 = vld [vmem:[#allocation8 + $0x180] sm:$0xff]
    %v447 = vld [vmem:[#allocation8 + $0x188] sm:$0xff]
    %v448 = vld [vmem:[#allocation8 + $0x190] sm:$0xff]
    %v449 = vld [vmem:[#allocation8 + $0x198] sm:$0xff]
    %v450 = vld [vmem:[#allocation8 + $0x1a0] sm:$0xff]
    %v451 = vld [vmem:[#allocation8 + $0x1a8] sm:$0xff]
    %v452 = vld [vmem:[#allocation8 + $0x1b0] sm:$0xff]
    %v453 = vld [vmem:[#allocation8 + $0x1b8] sm:$0xff]
    %v454 = vld [vmem:[#allocation8 + $0x1c0] sm:$0xff]
    %v455 = vld [vmem:[#allocation8 + $0x1c8] sm:$0xff]
    %v456 = vld [vmem:[#allocation8 + $0x1d0] sm:$0xff]
    %v457 = vld [vmem:[#allocation8 + $0x1d8] sm:$0xff]
    %v458 = vld [vmem:[#allocation8 + $0x1e0] sm:$0xff]
    %v459 = vld [vmem:[#allocation8 + $0x1e8] sm:$0xff]
    %v460 = vld [vmem:[#allocation8 + $0x1f0] sm:$0xff]
    %v461 = vld [vmem:[#allocation8 + $0x1f8] sm:$0xff]
    %462 = vmatprep.subr.mxu0 %v399
    %463 = vmatpush1.msra.mxu0 %v398
    %464 = vmatprep.subr.mxu0 %v403
    %465 = vmatpush1.msra.mxu0 %v402
    %466 = vmatprep.subr.mxu0 %v407
    %467 = vmatpush1.msra.mxu0 %v406
    %468 = vmatprep.subr.mxu0 %v411
    %469 = vmatpush1.msra.mxu0 %v410
    %470 = vmatprep.subr.mxu0 %v415
    %471 = vmatpush1.msra.mxu0 %v414
    %472 = vmatprep.subr.mxu0 %v419
    %473 = vmatpush1.msra.mxu0 %v418
    %474 = vmatprep.subr.mxu0 %v423
    %475 = vmatpush1.msra.mxu0 %v422
    %476 = vmatprep.subr.mxu0 %v427
    %477 = vmatpush1.msra.mxu0 %v426
    %478 = vmatprep.subr.mxu0 %v431
    %479 = vmatpush1.msra.mxu0 %v430
    %480 = vmatprep.subr.mxu0 %v435
    %481 = vmatpush1.msra.mxu0 %v434
    %482 = vmatprep.subr.mxu0 %v439
    %483 = vmatpush1.msra.mxu0 %v438
    %484 = vmatprep.subr.mxu0 %v443
    %485 = vmatpush1.msra.mxu0 %v442
    %486 = vmatprep.subr.mxu0 %v447
    %487 = vmatpush1.msra.mxu0 %v446
    %488 = vmatprep.subr.mxu0 %v451
    %489 = vmatpush1.msra.mxu0 %v450
    %490 = vmatprep.subr.mxu0 %v455
    %491 = vmatpush1.msra.mxu0 %v454
    %492 = vmatprep.subr.mxu0 %v459
    %493 = vmatpush1.msra.mxu0 %v458
    %494 = vmatprep.subr.mxu0 0.0
    %495 = vmatpush1.msra.mxu0 0.0
    %496 = vmatprep.subr.mxu0 0.0
    %497 = vmatpush1.msra.mxu0 0.0
    %498 = vmatprep.subr.mxu0 0.0
    %499 = vmatpush1.msra.mxu0 0.0
    %500 = vmatprep.subr.mxu0 0.0
    %501 = vmatpush1.msra.mxu0 0.0
    %502 = vmatprep.subr.mxu0 0.0
    %503 = vmatpush1.msra.mxu0 0.0
    %504 = vmatprep.subr.mxu0 0.0
    %505 = vmatpush1.msra.mxu0 0.0
    %506 = vmatprep.subr.mxu0 0.0
    %507 = vmatpush1.msra.mxu0 0.0
    %508 = vmatprep.subr.mxu0 0.0
    %509 = vmatpush1.msra.mxu0 0.0
    %510 = vmatprep.subr.mxu0 0.0
    %511 = vmatpush1.msra.mxu0 0.0
    %512 = vmatprep.subr.mxu0 0.0
    %513 = vmatpush1.msra.mxu0 0.0
    %514 = vmatprep.subr.mxu0 0.0
    %515 = vmatpush1.msra.mxu0 0.0
    %516 = vmatprep.subr.mxu0 0.0
    %517 = vmatpush1.msra.mxu0 0.0
    %518 = vmatprep.subr.mxu0 0.0
    %519 = vmatpush1.msra.mxu0 0.0
    %520 = vmatprep.subr.mxu0 0.0
    %521 = vmatpush1.msra.mxu0 0.0
    %522 = vmatprep.subr.mxu0 0.0
    %523 = vmatpush1.msra.mxu0 0.0
    %524 = vmatprep.subr.mxu0 0.0
    %525 = vmatpush1.msra.mxu0 0.0
    %526 = vmatprep.mubr.f32.mxu0 0.0
    %527 = vmatmul.mubr.f32.gmra.mrb[0].mxu0 0.0
    %v528 = vpop.f32.mrb[0].mxu0
    %v529 = vadd.f32 0.0, %v528
    %v530 = vpop.f32.mrb[0].mxu0
    %v531 = vadd.f32 0.0, %v530
    %532 = vdwg.mxu0
    %533 = vmatprep.subr.mxu0 %v401
    %534 = vmatpush1.msra.mxu0 %v400
    %535 = vmatprep.subr.mxu0 %v405
    %536 = vmatpush1.msra.mxu0 %v404
    %537 = vmatprep.subr.mxu0 %v409
    %538 = vmatpush1.msra.mxu0 %v408
    %539 = vmatprep.subr.mxu0 %v413
    %540 = vmatpush1.msra.mxu0 %v412
    %541 = vmatprep.subr.mxu0 %v417
    %542 = vmatpush1.msra.mxu0 %v416
    %543 = vmatprep.subr.mxu0 %v421
    %544 = vmatpush1.msra.mxu0 %v420
    %545 = vmatprep.subr.mxu0 %v425
    %546 = vmatpush1.msra.mxu0 %v424
    %547 = vmatprep.subr.mxu0 %v429
    %548 = vmatpush1.msra.mxu0 %v428
    %549 = vmatprep.subr.mxu0 %v433
    %550 = vmatpush1.msra.mxu0 %v432
    %551 = vmatprep.subr.mxu0 %v437
    %552 = vmatpush1.msra.mxu0 %v436
    %553 = vmatprep.subr.mxu0 %v441
    %554 = vmatpush1.msra.mxu0 %v440
    %555 = vmatprep.subr.mxu0 %v445
    %556 = vmatpush1.msra.mxu0 %v444
    %557 = vmatprep.subr.mxu0 %v449
    %558 = vmatpush1.msra.mxu0 %v448
    %559 = vmatprep.subr.mxu0 %v453
    %560 = vmatpush1.msra.mxu0 %v452
    %561 = vmatprep.subr.mxu0 %v457
    %562 = vmatpush1.msra.mxu0 %v456
    %563 = vmatprep.subr.mxu0 %v461
    %564 = vmatpush1.msra.mxu0 %v460
    %565 = vmatprep.subr.mxu0 0.0
    %566 = vmatpush1.msra.mxu0 0.0
    %567 = vmatprep.subr.mxu0 0.0
    %568 = vmatpush1.msra.mxu0 0.0
    %569 = vmatprep.subr.mxu0 0.0
    %570 = vmatpush1.msra.mxu0 0.0
    %571 = vmatprep.subr.mxu0 0.0
    %572 = vmatpush1.msra.mxu0 0.0
    %573 = vmatprep.subr.mxu0 0.0
    %574 = vmatpush1.msra.mxu0 0.0
    %575 = vmatprep.subr.mxu0 0.0
    %576 = vmatpush1.msra.mxu0 0.0
    %577 = vmatprep.subr.mxu0 0.0
    %578 = vmatpush1.msra.mxu0 0.0
    %579 = vmatprep.subr.mxu0 0.0
    %580 = vmatpush1.msra.mxu0 0.0
    %581 = vmatprep.subr.mxu0 0.0
    %582 = vmatpush1.msra.mxu0 0.0
    %583 = vmatprep.subr.mxu0 0.0
    %584 = vmatpush1.msra.mxu0 0.0
    %585 = vmatprep.subr.mxu0 0.0
    %586 = vmatpush1.msra.mxu0 0.0
    %587 = vmatprep.subr.mxu0 0.0
    %588 = vmatpush1.msra.mxu0 0.0
    %589 = vmatprep.subr.mxu0 0.0
    %590 = vmatpush1.msra.mxu0 0.0
    %591 = vmatprep.subr.mxu0 0.0
    %592 = vmatpush1.msra.mxu0 0.0
    %593 = vmatprep.subr.mxu0 0.0
    %594 = vmatpush1.msra.mxu0 0.0
    %595 = vmatprep.subr.mxu0 0.0
    %596 = vmatpush1.msra.mxu0 0.0
    %597 = vmatprep.mubr.f32.mxu0 0.0
    %598 = vmatmul.mubr.f32.gmra.mrb[0].mxu0 0.0
    %v599 = vpop.f32.mrb[0].mxu0
    %v600 = vadd.f32 0.0, %v599
    %v601 = vpop.f32.mrb[0].mxu0
    %v602 = vadd.f32 0.0, %v601
    %603 = vdwg.mxu0
    %v604 = vadd.f32 %v394, %v529
    %v605 = vadd.f32 %v395, %v531
    %v606 = vadd.f32 %v396, %v600
    %v607 = vadd.f32 %v397, %v602
    %v608 = vmul.f32 %v604, 0.5
    %v609 = vmul.f32 %v605, 0.5
    %v610 = vmul.f32 %v606, 0.5
    %v611 = vtanh.pop %v608
    %v612 = vtanh.pop %v609
    %v613 = vtanh.pop %v610
    %v614 = vmul.f32 %v611, 0.5
    %v615 = vmul.f32 %v612, 0.5
    %v616 = vmul.f32 %v613, 0.5
    %v617 = vadd.f32 %v614, 0.5
    %v618 = vadd.f32 %v615, 0.5
    %v619 = vadd.f32 %v616, 0.5
    %v620 = vtanh.pop %v607
    %v621 = vmul.f32 %v618, 0.0
    %v622 = vmul.f32 %v617, %v620
    %v623 = vadd.f32 %v621, %v622
    %v624 = vtanh.pop %v623
    %v625 = vmul.f32 %v619, %v624
    %s626 = scalar_lea.vmem [#allocation2], 32
    %v627 = vld [vmem:[%s626] sm:$0xff]
    %v628 = vld [vmem:[%s626 + $0x8] sm:$0xff]
    %v629 = vld [vmem:[%s626 + $0x10] sm:$0xff]
    %v630 = vld [vmem:[%s626 + $0x18] sm:$0xff]
    %631 = vmatprep.subr.mxu0 %v399
    %632 = vmatpush1.msra.mxu0 %v398
    %633 = vmatprep.subr.mxu0 %v403
    %634 = vmatpush1.msra.mxu0 %v402
    %635 = vmatprep.subr.mxu0 %v407
    %636 = vmatpush1.msra.mxu0 %v406
    %637 = vmatprep.subr.mxu0 %v411
    %638 = vmatpush1.msra.mxu0 %v410
    %639 = vmatprep.subr.mxu0 %v415
    %640 = vmatpush1.msra.mxu0 %v414
    %641 = vmatprep.subr.mxu0 %v419
    %642 = vmatpush1.msra.mxu0 %v418
    %643 = vmatprep.subr.mxu0 %v423
    %644 = vmatpush1.msra.mxu0 %v422
    %645 = vmatprep.subr.mxu0 %v427
    %646 = vmatpush1.msra.mxu0 %v426
    %647 = vmatprep.subr.mxu0 %v431
    %648 = vmatpush1.msra.mxu0 %v430
    %649 = vmatprep.subr.mxu0 %v435
    %650 = vmatpush1.msra.mxu0 %v434
    %651 = vmatprep.subr.mxu0 %v439
    %652 = vmatpush1.msra.mxu0 %v438
    %653 = vmatprep.subr.mxu0 %v443
    %654 = vmatpush1.msra.mxu0 %v442
    %655 = vmatprep.subr.mxu0 %v447
    %656 = vmatpush1.msra.mxu0 %v446
    %657 = vmatprep.subr.mxu0 %v451
    %658 = vmatpush1.msra.mxu0 %v450
    %659 = vmatprep.subr.mxu0 %v455
    %660 = vmatpush1.msra.mxu0 %v454
    %661 = vmatprep.subr.mxu0 %v459
    %662 = vmatpush1.msra.mxu0 %v458
    %663 = vmatprep.subr.mxu0 0.0
    %664 = vmatpush1.msra.mxu0 0.0
    %665 = vmatprep.subr.mxu0 0.0
    %666 = vmatpush1.msra.mxu0 0.0
    %667 = vmatprep.subr.mxu0 0.0
    %668 = vmatpush1.msra.mxu0 0.0
    %669 = vmatprep.subr.mxu0 0.0
    %670 = vmatpush1.msra.mxu0 0.0
    %671 = vmatprep.subr.mxu0 0.0
    %672 = vmatpush1.msra.mxu0 0.0
    %673 = vmatprep.subr.mxu0 0.0
    %674 = vmatpush1.msra.mxu0 0.0
    %675 = vmatprep.subr.mxu0 0.0
    %676 = vmatpush1.msra.mxu0 0.0
    %677 = vmatprep.subr.mxu0 0.0
    %678 = vmatpush1.msra.mxu0 0.0
    %679 = vmatprep.subr.mxu0 0.0
    %680 = vmatpush1.msra.mxu0 0.0
    %681 = vmatprep.subr.mxu0 0.0
    %682 = vmatpush1.msra.mxu0 0.0
    %683 = vmatprep.subr.mxu0 0.0
    %684 = vmatpush1.msra.mxu0 0.0
    %685 = vmatprep.subr.mxu0 0.0
    %686 = vmatpush1.msra.mxu0 0.0
    %687 = vmatprep.subr.mxu0 0.0
    %688 = vmatpush1.msra.mxu0 0.0
    %689 = vmatprep.subr.mxu0 0.0
    %690 = vmatpush1.msra.mxu0 0.0
    %691 = vmatprep.subr.mxu0 0.0
    %692 = vmatpush1.msra.mxu0 0.0
    %693 = vmatprep.subr.mxu0 0.0
    %694 = vmatpush1.msra.mxu0 0.0
    %695 = vmatprep.mubr.f32.mxu0 0.0
    %696 = vmatmul.mubr.f32.gmra.mrb[0].mxu0 %v625
    %v697 = vpop.f32.mrb[0].mxu0
    %v698 = vadd.f32 0.0, %v697
    %v699 = vpop.f32.mrb[0].mxu0
    %v700 = vadd.f32 0.0, %v699
    %701 = vdwg.mxu0
    %702 = vmatprep.subr.mxu0 %v401
    %703 = vmatpush1.msra.mxu0 %v400
    %704 = vmatprep.subr.mxu0 %v405
    %705 = vmatpush1.msra.mxu0 %v404
    %706 = vmatprep.subr.mxu0 %v409
    %707 = vmatpush1.msra.mxu0 %v408
    %708 = vmatprep.subr.mxu0 %v413
    %709 = vmatpush1.msra.mxu0 %v412
    %710 = vmatprep.subr.mxu0 %v417
    %711 = vmatpush1.msra.mxu0 %v416
    %712 = vmatprep.subr.mxu0 %v421
    %713 = vmatpush1.msra.mxu0 %v420
    %714 = vmatprep.subr.mxu0 %v425
    %715 = vmatpush1.msra.mxu0 %v424
    %716 = vmatprep.subr.mxu0 %v429
    %717 = vmatpush1.msra.mxu0 %v428
    %718 = vmatprep.subr.mxu0 %v433
    %719 = vmatpush1.msra.mxu0 %v432
    %720 = vmatprep.subr.mxu0 %v437
    %721 = vmatpush1.msra.mxu0 %v436
    %722 = vmatprep.subr.mxu0 %v441
    %723 = vmatpush1.msra.mxu0 %v440
    %724 = vmatprep.subr.mxu0 %v445
    %725 = vmatpush1.msra.mxu0 %v444
    %726 = vmatprep.subr.mxu0 %v449
    %727 = vmatpush1.msra.mxu0 %v448
    %728 = vmatprep.subr.mxu0 %v453
    %729 = vmatpush1.msra.mxu0 %v452
    %730 = vmatprep.subr.mxu0 %v457
    %731 = vmatpush1.msra.mxu0 %v456
    %732 = vmatprep.subr.mxu0 %v461
    %733 = vmatpush1.msra.mxu0 %v460
    %734 = vmatprep.subr.mxu0 0.0
    %735 = vmatpush1.msra.mxu0 0.0
    %736 = vmatprep.subr.mxu0 0.0
    %737 = vmatpush1.msra.mxu0 0.0
    %738 = vmatprep.subr.mxu0 0.0
    %739 = vmatpush1.msra.mxu0 0.0
    %740 = vmatprep.subr.mxu0 0.0
    %741 = vmatpush1.msra.mxu0 0.0
    %742 = vmatprep.subr.mxu0 0.0
    %743 = vmatpush1.msra.mxu0 0.0
    %744 = vmatprep.subr.mxu0 0.0
    %745 = vmatpush1.msra.mxu0 0.0
    %746 = vmatprep.subr.mxu0 0.0
    %747 = vmatpush1.msra.mxu0 0.0
    %748 = vmatprep.subr.mxu0 0.0
    %749 = vmatpush1.msra.mxu0 0.0
    %750 = vmatprep.subr.mxu0 0.0
    %751 = vmatpush1.msra.mxu0 0.0
    %752 = vmatprep.subr.mxu0 0.0
    %753 = vmatpush1.msra.mxu0 0.0
    %754 = vmatprep.subr.mxu0 0.0
    %755 = vmatpush1.msra.mxu0 0.0
    %756 = vmatprep.subr.mxu0 0.0
    %757 = vmatpush1.msra.mxu0 0.0
    %758 = vmatprep.subr.mxu0 0.0
    %759 = vmatpush1.msra.mxu0 0.0
    %760 = vmatprep.subr.mxu0 0.0
    %761 = vmatpush1.msra.mxu0 0.0
    %762 = vmatprep.subr.mxu0 0.0
    %763 = vmatpush1.msra.mxu0 0.0
    %764 = vmatprep.subr.mxu0 0.0
    %765 = vmatpush1.msra.mxu0 0.0
    %766 = vmatprep.mubr.f32.mxu0 0.0
    %767 = vmatmul.mubr.f32.gmra.mrb[0].mxu0 %v625
    %v768 = vpop.f32.mrb[0].mxu0
    %v769 = vadd.f32 0.0, %v768
    %v770 = vpop.f32.mrb[0].mxu0
    %v771 = vadd.f32 0.0, %v770
    %772 = vdwg.mxu0
    %v773 = vadd.f32 %v627, %v698
    %v774 = vadd.f32 %v628, %v700
    %v775 = vadd.f32 %v629, %v769
    %v776 = vadd.f32 %v630, %v771
    %v777 = vmul.f32 %v773, 0.5
    %v778 = vmul.f32 %v774, 0.5
    %v779 = vmul.f32 %v775, 0.5
    %v780 = vtanh.pop %v777
    %v781 = vtanh.pop %v778
    %v782 = vtanh.pop %v779
    %v783 = vmul.f32 %v780, 0.5
    %v784 = vmul.f32 %v781, 0.5
    %v785 = vmul.f32 %v782, 0.5
    %v786 = vadd.f32 %v783, 0.5
    %v787 = vadd.f32 %v784, 0.5
    %v788 = vadd.f32 %v785, 0.5
    %v789 = vtanh.pop %v776
    %v790 = vmul.f32 %v787, %v623
    %v791 = vmul.f32 %v786, %v789
    %v792 = vadd.f32 %v790, %v791
    %v793 = vtanh.pop %v792
    %v794 = vmul.f32 %v788, %v793
    %s795 = scalar_lea.vmem [#allocation2], 64
    %v796 = vld [vmem:[%s795] sm:$0xff]
    %v797 = vld [vmem:[%s795 + $0x8] sm:$0xff]
    %v798 = vld [vmem:[%s795 + $0x10] sm:$0xff]
    %v799 = vld [vmem:[%s795 + $0x18] sm:$0xff]
    %800 = vmatprep.subr.mxu0 %v399
    %801 = vmatpush1.msra.mxu0 %v398
    %802 = vmatprep.subr.mxu0 %v403
    %803 = vmatpush1.msra.mxu0 %v402
    %804 = vmatprep.subr.mxu0 %v407
    %805 = vmatpush1.msra.mxu0 %v406
    %806 = vmatprep.subr.mxu0 %v411
    %807 = vmatpush1.msra.mxu0 %v410
    %808 = vmatprep.subr.mxu0 %v415
    %809 = vmatpush1.msra.mxu0 %v414
    %810 = vmatprep.subr.mxu0 %v419
    %811 = vmatpush1.msra.mxu0 %v418
    %812 = vmatprep.subr.mxu0 %v423
    %813 = vmatpush1.msra.mxu0 %v422
    %814 = vmatprep.subr.mxu0 %v427
    %815 = vmatpush1.msra.mxu0 %v426
    %816 = vmatprep.subr.mxu0 %v431
    %817 = vmatpush1.msra.mxu0 %v430
    %818 = vmatprep.subr.mxu0 %v435
    %819 = vmatpush1.msra.mxu0 %v434
    %820 = vmatprep.subr.mxu0 %v439
    %821 = vmatpush1.msra.mxu0 %v438
    %822 = vmatprep.subr.mxu0 %v443
    %823 = vmatpush1.msra.mxu0 %v442
    %824 = vmatprep.subr.mxu0 %v447
    %825 = vmatpush1.msra.mxu0 %v446
    %826 = vmatprep.subr.mxu0 %v451
    %827 = vmatpush1.msra.mxu0 %v450
    %828 = vmatprep.subr.mxu0 %v455
    %829 = vmatpush1.msra.mxu0 %v454
    %830 = vmatprep.subr.mxu0 %v459
    %831 = vmatpush1.msra.mxu0 %v458
    %832 = vmatprep.subr.mxu0 0.0
    %833 = vmatpush1.msra.mxu0 0.0
    %834 = vmatprep.subr.mxu0 0.0
    %835 = vmatpush1.msra.mxu0 0.0
    %836 = vmatprep.subr.mxu0 0.0
    %837 = vmatpush1.msra.mxu0 0.0
    %838 = vmatprep.subr.mxu0 0.0
    %839 = vmatpush1.msra.mxu0 0.0
    %840 = vmatprep.subr.mxu0 0.0
    %841 = vmatpush1.msra.mxu0 0.0
    %842 = vmatprep.subr.mxu0 0.0
    %843 = vmatpush1.msra.mxu0 0.0
    %844 = vmatprep.subr.mxu0 0.0
    %845 = vmatpush1.msra.mxu0 0.0
    %846 = vmatprep.subr.mxu0 0.0
    %847 = vmatpush1.msra.mxu0 0.0
    %848 = vmatprep.subr.mxu0 0.0
    %849 = vmatpush1.msra.mxu0 0.0
    %850 = vmatprep.subr.mxu0 0.0
    %851 = vmatpush1.msra.mxu0 0.0
    %852 = vmatprep.subr.mxu0 0.0
    %853 = vmatpush1.msra.mxu0 0.0
    %854 = vmatprep.subr.mxu0 0.0
    %855 = vmatpush1.msra.mxu0 0.0
    %856 = vmatprep.subr.mxu0 0.0
    %857 = vmatpush1.msra.mxu0 0.0
    %858 = vmatprep.subr.mxu0 0.0
    %859 = vmatpush1.msra.mxu0 0.0
    %860 = vmatprep.subr.mxu0 0.0
    %861 = vmatpush1.msra.mxu0 0.0
    %862 = vmatprep.subr.mxu0 0.0
    %863 = vmatpush1.msra.mxu0 0.0
    %864 = vmatprep.mubr.f32.mxu0 0.0
    %865 = vmatmul.mubr.f32.gmra.mrb[0].mxu0 %v794
    %v866 = vpop.f32.mrb[0].mxu0
    %v867 = vadd.f32 0.0, %v866
    %v868 = vpop.f32.mrb[0].mxu0
    %v869 = vadd.f32 0.0, %v868
    %870 = vdwg.mxu0
    %871 = vmatprep.subr.mxu0 %v401
    %872 = vmatpush1.msra.mxu0 %v400
    %873 = vmatprep.subr.mxu0 %v405
    %874 = vmatpush1.msra.mxu0 %v404
    %875 = vmatprep.subr.mxu0 %v409
    %876 = vmatpush1.msra.mxu0 %v408
    %877 = vmatprep.subr.mxu0 %v413
    %878 = vmatpush1.msra.mxu0 %v412
    %879 = vmatprep.subr.mxu0 %v417
    %880 = vmatpush1.msra.mxu0 %v416
    %881 = vmatprep.subr.mxu0 %v421
    %882 = vmatpush1.msra.mxu0 %v420
    %883 = vmatprep.subr.mxu0 %v425
    %884 = vmatpush1.msra.mxu0 %v424
    %885 = vmatprep.subr.mxu0 %v429
    %886 = vmatpush1.msra.mxu0 %v428
    %887 = vmatprep.subr.mxu0 %v433
    %888 = vmatpush1.msra.mxu0 %v432
    %889 = vmatprep.subr.mxu0 %v437
    %890 = vmatpush1.msra.mxu0 %v436
    %891 = vmatprep.subr.mxu0 %v441
    %892 = vmatpush1.msra.mxu0 %v440
    %893 = vmatprep.subr.mxu0 %v445
    %894 = vmatpush1.msra.mxu0 %v444
    %895 = vmatprep.subr.mxu0 %v449
    %896 = vmatpush1.msra.mxu0 %v448
    %897 = vmatprep.subr.mxu0 %v453
    %898 = vmatpush1.msra.mxu0 %v452
    %899 = vmatprep.subr.mxu0 %v457
    %900 = vmatpush1.msra.mxu0 %v456
    %901 = vmatprep.subr.mxu0 %v461
    %902 = vmatpush1.msra.mxu0 %v460
    %903 = vmatprep.subr.mxu0 0.0
    %904 = vmatpush1.msra.mxu0 0.0
    %905 = vmatprep.subr.mxu0 0.0
    %906 = vmatpush1.msra.mxu0 0.0
    %907 = vmatprep.subr.mxu0 0.0
    %908 = vmatpush1.msra.mxu0 0.0
    %909 = vmatprep.subr.mxu0 0.0
    %910 = vmatpush1.msra.mxu0 0.0
    %911 = vmatprep.subr.mxu0 0.0
    %912 = vmatpush1.msra.mxu0 0.0
    %913 = vmatprep.subr.mxu0 0.0
    %914 = vmatpush1.msra.mxu0 0.0
    %915 = vmatprep.subr.mxu0 0.0
    %916 = vmatpush1.msra.mxu0 0.0
    %917 = vmatprep.subr.mxu0 0.0
    %918 = vmatpush1.msra.mxu0 0.0
    %919 = vmatprep.subr.mxu0 0.0
    %920 = vmatpush1.msra.mxu0 0.0
    %921 = vmatprep.subr.mxu0 0.0
    %922 = vmatpush1.msra.mxu0 0.0
    %923 = vmatprep.subr.mxu0 0.0
    %924 = vmatpush1.msra.mxu0 0.0
    %925 = vmatprep.subr.mxu0 0.0
    %926 = vmatpush1.msra.mxu0 0.0
    %927 = vmatprep.subr.mxu0 0.0
    %928 = vmatpush1.msra.mxu0 0.0
    %929 = vmatprep.subr.mxu0 0.0
    %930 = vmatpush1.msra.mxu0 0.0
    %931 = vmatprep.subr.mxu0 0.0
    %932 = vmatpush1.msra.mxu0 0.0
    %933 = vmatprep.subr.mxu0 0.0
    %934 = vmatpush1.msra.mxu0 0.0
    %935 = vmatprep.mubr.f32.mxu0 0.0
    %936 = vmatmul.mubr.f32.gmra.mrb[0].mxu0 %v794
    %v937 = vpop.f32.mrb[0].mxu0
    %v938 = vadd.f32 0.0, %v937
    %v939 = vpop.f32.mrb[0].mxu0
    %v940 = vadd.f32 0.0, %v939
    %941 = vdwg.mxu0
    %v942 = vadd.f32 %v796, %v867
    %v943 = vadd.f32 %v797, %v869
    %v944 = vadd.f32 %v798, %v938
    %v945 = vadd.f32 %v799, %v940
    %v946 = vmul.f32 %v942, 0.5
    %v947 = vmul.f32 %v943, 0.5
    %v948 = vmul.f32 %v944, 0.5
    %v949 = vtanh.pop %v946
    %v950 = vtanh.pop %v947
    %v951 = vtanh.pop %v948
    %v952 = vmul.f32 %v949, 0.5
    %v953 = vmul.f32 %v950, 0.5
    %v954 = vmul.f32 %v951, 0.5
    %v955 = vadd.f32 %v952, 0.5
    %v956 = vadd.f32 %v953, 0.5
    %v957 = vadd.f32 %v954, 0.5
    %v958 = vtanh.pop %v945
    %v959 = vmul.f32 %v956, %v792
    %v960 = vmul.f32 %v955, %v958
    %v961 = vadd.f32 %v959, %v960
    %v962 = vtanh.pop %v961
    %v963 = vmul.f32 %v957, %v962
    %s964 = scalar_lea.vmem [#allocation2], 96
    %v965 = vld [vmem:[%s964] sm:$0xff]
    %v966 = vld [vmem:[%s964 + $0x8] sm:$0xff]
    %v967 = vld [vmem:[%s964 + $0x10] sm:$0xff]
    %v968 = vld [vmem:[%s964 + $0x18] sm:$0xff]
    %969 = vmatprep.subr.mxu0 %v399
    %970 = vmatpush1.msra.mxu0 %v398
    %971 = vmatprep.subr.mxu0 %v403
    %972 = vmatpush1.msra.mxu0 %v402
    %973 = vmatprep.subr.mxu0 %v407
    %974 = vmatpush1.msra.mxu0 %v406
    %975 = vmatprep.subr.mxu0 %v411
    %976 = vmatpush1.msra.mxu0 %v410
    %977 = vmatprep.subr.mxu0 %v415
    %978 = vmatpush1.msra.mxu0 %v414
    %979 = vmatprep.subr.mxu0 %v419
    %980 = vmatpush1.msra.mxu0 %v418
    %981 = vmatprep.subr.mxu0 %v423
    %982 = vmatpush1.msra.mxu0 %v422
    %983 = vmatprep.subr.mxu0 %v427
    %984 = vmatpush1.msra.mxu0 %v426
    %985 = vmatprep.subr.mxu0 %v431
    %986 = vmatpush1.msra.mxu0 %v430
    %987 = vmatprep.subr.mxu0 %v435
    %988 = vmatpush1.msra.mxu0 %v434
    %989 = vmatprep.subr.mxu0 %v439
    %990 = vmatpush1.msra.mxu0 %v438
    %991 = vmatprep.subr.mxu0 %v443
    %992 = vmatpush1.msra.mxu0 %v442
    %993 = vmatprep.subr.mxu0 %v447
    %994 = vmatpush1.msra.mxu0 %v446
    %995 = vmatprep.subr.mxu0 %v451
    %996 = vmatpush1.msra.mxu0 %v450
    %997 = vmatprep.subr.mxu0 %v455
    %998 = vmatpush1.msra.mxu0 %v454
    %999 = vmatprep.subr.mxu0 %v459
    %1000 = vmatpush1.msra.mxu0 %v458
    %1001 = vmatprep.subr.mxu0 0.0
    %1002 = vmatpush1.msra.mxu0 0.0
    %1003 = vmatprep.subr.mxu0 0.0
    %1004 = vmatpush1.msra.mxu0 0.0
    %1005 = vmatprep.subr.mxu0 0.0
    %1006 = vmatpush1.msra.mxu0 0.0
    %1007 = vmatprep.subr.mxu0 0.0
    %1008 = vmatpush1.msra.mxu0 0.0
    %1009 = vmatprep.subr.mxu0 0.0
    %1010 = vmatpush1.msra.mxu0 0.0
    %1011 = vmatprep.subr.mxu0 0.0
    %1012 = vmatpush1.msra.mxu0 0.0
    %1013 = vmatprep.subr.mxu0 0.0
    %1014 = vmatpush1.msra.mxu0 0.0
    %1015 = vmatprep.subr.mxu0 0.0
    %1016 = vmatpush1.msra.mxu0 0.0
    %1017 = vmatprep.subr.mxu0 0.0
    %1018 = vmatpush1.msra.mxu0 0.0
    %1019 = vmatprep.subr.mxu0 0.0
    %1020 = vmatpush1.msra.mxu0 0.0
    %1021 = vmatprep.subr.mxu0 0.0
    %1022 = vmatpush1.msra.mxu0 0.0
    %1023 = vmatprep.subr.mxu0 0.0
    %1024 = vmatpush1.msra.mxu0 0.0
    %1025 = vmatprep.subr.mxu0 0.0
    %1026 = vmatpush1.msra.mxu0 0.0
    %1027 = vmatprep.subr.mxu0 0.0
    %1028 = vmatpush1.msra.mxu0 0.0
    %1029 = vmatprep.subr.mxu0 0.0
    %1030 = vmatpush1.msra.mxu0 0.0
    %1031 = vmatprep.subr.mxu0 0.0
    %1032 = vmatpush1.msra.mxu0 0.0
    %1033 = vmatprep.mubr.f32.mxu0 0.0
    %1034 = vmatmul.mubr.f32.gmra.mrb[0].mxu0 %v963
    %v1035 = vpop.f32.mrb[0].mxu0
    %v1036 = vadd.f32 0.0, %v1035
    %v1037 = vpop.f32.mrb[0].mxu0
    %v1038 = vadd.f32 0.0, %v1037
    %1039 = vdwg.mxu0
    %1040 = vmatprep.subr.mxu0 %v401
    %1041 = vmatpush1.msra.mxu0 %v400
    %1042 = vmatprep.subr.mxu0 %v405
    %1043 = vmatpush1.msra.mxu0 %v404
    %1044 = vmatprep.subr.mxu0 %v409
    %1045 = vmatpush1.msra.mxu0 %v408
    %1046 = vmatprep.subr.mxu0 %v413
    %1047 = vmatpush1.msra.mxu0 %v412
    %1048 = vmatprep.subr.mxu0 %v417
    %1049 = vmatpush1.msra.mxu0 %v416
    %1050 = vmatprep.subr.mxu0 %v421
    %1051 = vmatpush1.msra.mxu0 %v420
    %1052 = vmatprep.subr.mxu0 %v425
    %1053 = vmatpush1.msra.mxu0 %v424
    %1054 = vmatprep.subr.mxu0 %v429
    %1055 = vmatpush1.msra.mxu0 %v428
    %1056 = vmatprep.subr.mxu0 %v433
    %1057 = vmatpush1.msra.mxu0 %v432
    %1058 = vmatprep.subr.mxu0 %v437
    %1059 = vmatpush1.msra.mxu0 %v436
    %1060 = vmatprep.subr.mxu0 %v441
    %1061 = vmatpush1.msra.mxu0 %v440
    %1062 = vmatprep.subr.mxu0 %v445
    %1063 = vmatpush1.msra.mxu0 %v444
    %1064 = vmatprep.subr.mxu0 %v449
    %1065 = vmatpush1.msra.mxu0 %v448
    %1066 = vmatprep.subr.mxu0 %v453
    %1067 = vmatpush1.msra.mxu0 %v452
    %1068 = vmatprep.subr.mxu0 %v457
    %1069 = vmatpush1.msra.mxu0 %v456
    %1070 = vmatprep.subr.mxu0 %v461
    %1071 = vmatpush1.msra.mxu0 %v460
    %1072 = vmatprep.subr.mxu0 0.0
    %1073 = vmatpush1.msra.mxu0 0.0
    %1074 = vmatprep.subr.mxu0 0.0
    %1075 = vmatpush1.msra.mxu0 0.0
    %1076 = vmatprep.subr.mxu0 0.0
    %1077 = vmatpush1.msra.mxu0 0.0
    %1078 = vmatprep.subr.mxu0 0.0
    %1079 = vmatpush1.msra.mxu0 0.0
    %1080 = vmatprep.subr.mxu0 0.0
    %1081 = vmatpush1.msra.mxu0 0.0
    %1082 = vmatprep.subr.mxu0 0.0
    %1083 = vmatpush1.msra.mxu0 0.0
    %1084 = vmatprep.subr.mxu0 0.0
    %1085 = vmatpush1.msra.mxu0 0.0
    %1086 = vmatprep.subr.mxu0 0.0
    %1087 = vmatpush1.msra.mxu0 0.0
    %1088 = vmatprep.subr.mxu0 0.0
    %1089 = vmatpush1.msra.mxu0 0.0
    %1090 = vmatprep.subr.mxu0 0.0
    %1091 = vmatpush1.msra.mxu0 0.0
    %1092 = vmatprep.subr.mxu0 0.0
    %1093 = vmatpush1.msra.mxu0 0.0
    %1094 = vmatprep.subr.mxu0 0.0
    %1095 = vmatpush1.msra.mxu0 0.0
    %1096 = vmatprep.subr.mxu0 0.0
    %1097 = vmatpush1.msra.mxu0 0.0
    %1098 = vmatprep.subr.mxu0 0.0
    %1099 = vmatpush1.msra.mxu0 0.0
    %1100 = vmatprep.subr.mxu0 0.0
    %1101 = vmatpush1.msra.mxu0 0.0
    %1102 = vmatprep.subr.mxu0 0.0
    %1103 = vmatpush1.msra.mxu0 0.0
    %1104 = vmatprep.mubr.f32.mxu0 0.0
    %1105 = vmatmul.mubr.f32.gmra.mrb[0].mxu0 %v963
    %v1106 = vpop.f32.mrb[0].mxu0
    %v1107 = vadd.f32 0.0, %v1106
    %v1108 = vpop.f32.mrb[0].mxu0
    %v1109 = vadd.f32 0.0, %v1108
    %1110 = vdwg.mxu0
    %v1111 = vadd.f32 %v965, %v1036
    %v1112 = vadd.f32 %v966, %v1038
    %v1113 = vadd.f32 %v967, %v1107
    %v1114 = vadd.f32 %v968, %v1109
    %v1115 = vmul.f32 %v1111, 0.5
    %v1116 = vmul.f32 %v1112, 0.5
    %v1117 = vmul.f32 %v1113, 0.5
    %v1118 = vtanh.pop %v1115
    %v1119 = vtanh.pop %v1116
    %v1120 = vtanh.pop %v1117
    %v1121 = vmul.f32 %v1118, 0.5
    %v1122 = vmul.f32 %v1119, 0.5
    %v1123 = vmul.f32 %v1120, 0.5
    %v1124 = vadd.f32 %v1121, 0.5
    %v1125 = vadd.f32 %v1122, 0.5
    %v1126 = vadd.f32 %v1123, 0.5
    %v1127 = vtanh.pop %v1114
    %v1128 = vmul.f32 %v1125, %v961
    %v1129 = vmul.f32 %v1124, %v1127
    %v1130 = vadd.f32 %v1128, %v1129
    %v1131 = vtanh.pop %v1130
    %v1132 = vmul.f32 %v1126, %v1131
    %s1133 = scalar_lea.vmem [#allocation2], 128
    %v1134 = vld [vmem:[%s1133] sm:$0xff]
    %v1135 = vld [vmem:[%s1133 + $0x8] sm:$0xff]
    %v1136 = vld [vmem:[%s1133 + $0x10] sm:$0xff]
    %v1137 = vld [vmem:[%s1133 + $0x18] sm:$0xff]
    %1138 = vmatprep.subr.mxu0 %v399
    %1139 = vmatpush1.msra.mxu0 %v398
    %1140 = vmatprep.subr.mxu0 %v403
    %1141 = vmatpush1.msra.mxu0 %v402
    %1142 = vmatprep.subr.mxu0 %v407
    %1143 = vmatpush1.msra.mxu0 %v406
    %1144 = vmatprep.subr.mxu0 %v411
    %1145 = vmatpush1.msra.mxu0 %v410
    %1146 = vmatprep.subr.mxu0 %v415
    %1147 = vmatpush1.msra.mxu0 %v414
    %1148 = vmatprep.subr.mxu0 %v419
    %1149 = vmatpush1.msra.mxu0 %v418
    %1150 = vmatprep.subr.mxu0 %v423
    %1151 = vmatpush1.msra.mxu0 %v422
    %1152 = vmatprep.subr.mxu0 %v427
    %1153 = vmatpush1.msra.mxu0 %v426
    %1154 = vmatprep.subr.mxu0 %v431
    %1155 = vmatpush1.msra.mxu0 %v430
    %1156 = vmatprep.subr.mxu0 %v435
    %1157 = vmatpush1.msra.mxu0 %v434
    %1158 = vmatprep.subr.mxu0 %v439
    %1159 = vmatpush1.msra.mxu0 %v438
    %1160 = vmatprep.subr.mxu0 %v443
    %1161 = vmatpush1.msra.mxu0 %v442
    %1162 = vmatprep.subr.mxu0 %v447
    %1163 = vmatpush1.msra.mxu0 %v446
    %1164 = vmatprep.subr.mxu0 %v451
    %1165 = vmatpush1.msra.mxu0 %v450
    %1166 = vmatprep.subr.mxu0 %v455
    %1167 = vmatpush1.msra.mxu0 %v454
    %1168 = vmatprep.subr.mxu0 %v459
    %1169 = vmatpush1.msra.mxu0 %v458
    %1170 = vmatprep.subr.mxu0 0.0
    %1171 = vmatpush1.msra.mxu0 0.0
    %1172 = vmatprep.subr.mxu0 0.0
    %1173 = vmatpush1.msra.mxu0 0.0
    %1174 = vmatprep.subr.mxu0 0.0
    %1175 = vmatpush1.msra.mxu0 0.0
    %1176 = vmatprep.subr.mxu0 0.0
    %1177 = vmatpush1.msra.mxu0 0.0
    %1178 = vmatprep.subr.mxu0 0.0
    %1179 = vmatpush1.msra.mxu0 0.0
    %1180 = vmatprep.subr.mxu0 0.0
    %1181 = vmatpush1.msra.mxu0 0.0
    %1182 = vmatprep.subr.mxu0 0.0
    %1183 = vmatpush1.msra.mxu0 0.0
    %1184 = vmatprep.subr.mxu0 0.0
    %1185 = vmatpush1.msra.mxu0 0.0
    %1186 = vmatprep.subr.mxu0 0.0
    %1187 = vmatpush1.msra.mxu0 0.0
    %1188 = vmatprep.subr.mxu0 0.0
    %1189 = vmatpush1.msra.mxu0 0.0
    %1190 = vmatprep.subr.mxu0 0.0
    %1191 = vmatpush1.msra.mxu0 0.0
    %1192 = vmatprep.subr.mxu0 0.0
    %1193 = vmatpush1.msra.mxu0 0.0
    %1194 = vmatprep.subr.mxu0 0.0
    %1195 = vmatpush1.msra.mxu0 0.0
    %1196 = vmatprep.subr.mxu0 0.0
    %1197 = vmatpush1.msra.mxu0 0.0
    %1198 = vmatprep.subr.mxu0 0.0
    %1199 = vmatpush1.msra.mxu0 0.0
    %1200 = vmatprep.subr.mxu0 0.0
    %1201 = vmatpush1.msra.mxu0 0.0
    %1202 = vmatprep.mubr.f32.mxu0 0.0
    %1203 = vmatmul.mubr.f32.gmra.mrb[0].mxu0 %v1132
    %v1204 = vpop.f32.mrb[0].mxu0
    %v1205 = vadd.f32 0.0, %v1204
    %v1206 = vpop.f32.mrb[0].mxu0
    %v1207 = vadd.f32 0.0, %v1206
    %1208 = vdwg.mxu0
    %1209 = vmatprep.subr.mxu0 %v401
    %1210 = vmatpush1.msra.mxu0 %v400
    %1211 = vmatprep.subr.mxu0 %v405
    %1212 = vmatpush1.msra.mxu0 %v404
    %1213 = vmatprep.subr.mxu0 %v409
    %1214 = vmatpush1.msra.mxu0 %v408
    %1215 = vmatprep.subr.mxu0 %v413
    %1216 = vmatpush1.msra.mxu0 %v412
    %1217 = vmatprep.subr.mxu0 %v417
    %1218 = vmatpush1.msra.mxu0 %v416
    %1219 = vmatprep.subr.mxu0 %v421
    %1220 = vmatpush1.msra.mxu0 %v420
    %1221 = vmatprep.subr.mxu0 %v425
    %1222 = vmatpush1.msra.mxu0 %v424
    %1223 = vmatprep.subr.mxu0 %v429
    %1224 = vmatpush1.msra.mxu0 %v428
    %1225 = vmatprep.subr.mxu0 %v433
    %1226 = vmatpush1.msra.mxu0 %v432
    %1227 = vmatprep.subr.mxu0 %v437
    %1228 = vmatpush1.msra.mxu0 %v436
    %1229 = vmatprep.subr.mxu0 %v441
    %1230 = vmatpush1.msra.mxu0 %v440
    %1231 = vmatprep.subr.mxu0 %v445
    %1232 = vmatpush1.msra.mxu0 %v444
    %1233 = vmatprep.subr.mxu0 %v449
    %1234 = vmatpush1.msra.mxu0 %v448
    %1235 = vmatprep.subr.mxu0 %v453
    %1236 = vmatpush1.msra.mxu0 %v452
    %1237 = vmatprep.subr.mxu0 %v457
    %1238 = vmatpush1.msra.mxu0 %v456
    %1239 = vmatprep.subr.mxu0 %v461
    %1240 = vmatpush1.msra.mxu0 %v460
    %1241 = vmatprep.subr.mxu0 0.0
    %1242 = vmatpush1.msra.mxu0 0.0
    %1243 = vmatprep.subr.mxu0 0.0
    %1244 = vmatpush1.msra.mxu0 0.0
    %1245 = vmatprep.subr.mxu0 0.0
    %1246 = vmatpush1.msra.mxu0 0.0
    %1247 = vmatprep.subr.mxu0 0.0
    %1248 = vmatpush1.msra.mxu0 0.0
    %1249 = vmatprep.subr.mxu0 0.0
    %1250 = vmatpush1.msra.mxu0 0.0
    %1251 = vmatprep.subr.mxu0 0.0
    %1252 = vmatpush1.msra.mxu0 0.0
    %1253 = vmatprep.subr.mxu0 0.0
    %1254 = vmatpush1.msra.mxu0 0.0
    %1255 = vmatprep.subr.mxu0 0.0
    %1256 = vmatpush1.msra.mxu0 0.0
    %1257 = vmatprep.subr.mxu0 0.0
    %1258 = vmatpush1.msra.mxu0 0.0
    %1259 = vmatprep.subr.mxu0 0.0
    %1260 = vmatpush1.msra.mxu0 0.0
    %1261 = vmatprep.subr.mxu0 0.0
    %1262 = vmatpush1.msra.mxu0 0.0
    %1263 = vmatprep.subr.mxu0 0.0
    %1264 = vmatpush1.msra.mxu0 0.0
    %1265 = vmatprep.subr.mxu0 0.0
    %1266 = vmatpush1.msra.mxu0 0.0
    %1267 = vmatprep.subr.mxu0 0.0
    %1268 = vmatpush1.msra.mxu0 0.0
    %1269 = vmatprep.subr.mxu0 0.0
    %1270 = vmatpush1.msra.mxu0 0.0
    %1271 = vmatprep.subr.mxu0 0.0
    %1272 = vmatpush1.msra.mxu0 0.0
    %1273 = vmatprep.mubr.f32.mxu0 0.0
    %1274 = vmatmul.mubr.f32.gmra.mrb[0].mxu0 %v1132
    %v1275 = vpop.f32.mrb[0].mxu0
    %v1276 = vadd.f32 0.0, %v1275
    %v1277 = vpop.f32.mrb[0].mxu0
    %v1278 = vadd.f32 0.0, %v1277
    %1279 = vdwg.mxu0
    %v1280 = vadd.f32 %v1134, %v1205
    %v1281 = vadd.f32 %v1135, %v1207
    %v1282 = vadd.f32 %v1136, %v1276
    %v1283 = vadd.f32 %v1137, %v1278
    %v1284 = vmul.f32 %v1280, 0.5
    %v1285 = vmul.f32 %v1281, 0.5
    %v1286 = vmul.f32 %v1282, 0.5
    %v1287 = vtanh.pop %v1284
    %v1288 = vtanh.pop %v1285
    %v1289 = vtanh.pop %v1286
    %v1290 = vmul.f32 %v1287, 0.5
    %v1291 = vmul.f32 %v1288, 0.5
    %v1292 = vmul.f32 %v1289, 0.5
    %v1293 = vadd.f32 %v1290, 0.5
    %v1294 = vadd.f32 %v1291, 0.5
    %v1295 = vadd.f32 %v1292, 0.5
    %v1296 = vtanh.pop %v1283
    %v1297 = vmul.f32 %v1294, %v1130
    %v1298 = vmul.f32 %v1293, %v1296
    %v1299 = vadd.f32 %v1297, %v1298
    %v1300 = vtanh.pop %v1299
    %v1301 = vmul.f32 %v1295, %v1300
    %s1302 = scalar_lea.vmem [#allocation2], 160
    %v1303 = vld [vmem:[%s1302] sm:$0xff]
    %v1304 = vld [vmem:[%s1302 + $0x8] sm:$0xff]
    %v1305 = vld [vmem:[%s1302 + $0x10] sm:$0xff]
    %v1306 = vld [vmem:[%s1302 + $0x18] sm:$0xff]
    %1307 = vmatprep.subr.mxu0 %v399
    %1308 = vmatpush1.msra.mxu0 %v398
    %1309 = vmatprep.subr.mxu0 %v403
    %1310 = vmatpush1.msra.mxu0 %v402
    %1311 = vmatprep.subr.mxu0 %v407
    %1312 = vmatpush1.msra.mxu0 %v406
    %1313 = vmatprep.subr.mxu0 %v411
    %1314 = vmatpush1.msra.mxu0 %v410
    %1315 = vmatprep.subr.mxu0 %v415
    %1316 = vmatpush1.msra.mxu0 %v414
    %1317 = vmatprep.subr.mxu0 %v419
    %1318 = vmatpush1.msra.mxu0 %v418
    %1319 = vmatprep.subr.mxu0 %v423
    %1320 = vmatpush1.msra.mxu0 %v422
    %1321 = vmatprep.subr.mxu0 %v427
    %1322 = vmatpush1.msra.mxu0 %v426
    %1323 = vmatprep.subr.mxu0 %v431
    %1324 = vmatpush1.msra.mxu0 %v430
    %1325 = vmatprep.subr.mxu0 %v435
    %1326 = vmatpush1.msra.mxu0 %v434
    %1327 = vmatprep.subr.mxu0 %v439
    %1328 = vmatpush1.msra.mxu0 %v438
    %1329 = vmatprep.subr.mxu0 %v443
    %1330 = vmatpush1.msra.mxu0 %v442
    %1331 = vmatprep.subr.mxu0 %v447
    %1332 = vmatpush1.msra.mxu0 %v446
    %1333 = vmatprep.subr.mxu0 %v451
    %1334 = vmatpush1.msra.mxu0 %v450
    %1335 = vmatprep.subr.mxu0 %v455
    %1336 = vmatpush1.msra.mxu0 %v454
    %1337 = vmatprep.subr.mxu0 %v459
    %1338 = vmatpush1.msra.mxu0 %v458
    %1339 = vmatprep.subr.mxu0 0.0
    %1340 = vmatpush1.msra.mxu0 0.0
    %1341 = vmatprep.subr.mxu0 0.0
    %1342 = vmatpush1.msra.mxu0 0.0
    %1343 = vmatprep.subr.mxu0 0.0
    %1344 = vmatpush1.msra.mxu0 0.0
    %1345 = vmatprep.subr.mxu0 0.0
    %1346 = vmatpush1.msra.mxu0 0.0
    %1347 = vmatprep.subr.mxu0 0.0
    %1348 = vmatpush1.msra.mxu0 0.0
    %1349 = vmatprep.subr.mxu0 0.0
    %1350 = vmatpush1.msra.mxu0 0.0
    %1351 = vmatprep.subr.mxu0 0.0
    %1352 = vmatpush1.msra.mxu0 0.0
    %1353 = vmatprep.subr.mxu0 0.0
    %1354 = vmatpush1.msra.mxu0 0.0
    %1355 = vmatprep.subr.mxu0 0.0
    %1356 = vmatpush1.msra.mxu0 0.0
    %1357 = vmatprep.subr.mxu0 0.0
    %1358 = vmatpush1.msra.mxu0 0.0
    %1359 = vmatprep.subr.mxu0 0.0
    %1360 = vmatpush1.msra.mxu0 0.0
    %1361 = vmatprep.subr.mxu0 0.0
    %1362 = vmatpush1.msra.mxu0 0.0
    %1363 = vmatprep.subr.mxu0 0.0
    %1364 = vmatpush1.msra.mxu0 0.0
    %1365 = vmatprep.subr.mxu0 0.0
    %1366 = vmatpush1.msra.mxu0 0.0
    %1367 = vmatprep.subr.mxu0 0.0
    %1368 = vmatpush1.msra.mxu0 0.0
    %1369 = vmatprep.subr.mxu0 0.0
    %1370 = vmatpush1.msra.mxu0 0.0
    %1371 = vmatprep.mubr.f32.mxu0 0.0
    %1372 = vmatmul.mubr.f32.gmra.mrb[0].mxu0 %v1301
    %v1373 = vpop.f32.mrb[0].mxu0
    %v1374 = vadd.f32 0.0, %v1373
    %v1375 = vpop.f32.mrb[0].mxu0
    %v1376 = vadd.f32 0.0, %v1375
    %1377 = vdwg.mxu0
    %1378 = vmatprep.subr.mxu0 %v401
    %1379 = vmatpush1.msra.mxu0 %v400
    %1380 = vmatprep.subr.mxu0 %v405
    %1381 = vmatpush1.msra.mxu0 %v404
    %1382 = vmatprep.subr.mxu0 %v409
    %1383 = vmatpush1.msra.mxu0 %v408
    %1384 = vmatprep.subr.mxu0 %v413
    %1385 = vmatpush1.msra.mxu0 %v412
    %1386 = vmatprep.subr.mxu0 %v417
    %1387 = vmatpush1.msra.mxu0 %v416
    %1388 = vmatprep.subr.mxu0 %v421
    %1389 = vmatpush1.msra.mxu0 %v420
    %1390 = vmatprep.subr.mxu0 %v425
    %1391 = vmatpush1.msra.mxu0 %v424
    %1392 = vmatprep.subr.mxu0 %v429
    %1393 = vmatpush1.msra.mxu0 %v428
    %1394 = vmatprep.subr.mxu0 %v433
    %1395 = vmatpush1.msra.mxu0 %v432
    %1396 = vmatprep.subr.mxu0 %v437
    %1397 = vmatpush1.msra.mxu0 %v436
    %1398 = vmatprep.subr.mxu0 %v441
    %1399 = vmatpush1.msra.mxu0 %v440
    %1400 = vmatprep.subr.mxu0 %v445
    %1401 = vmatpush1.msra.mxu0 %v444
    %1402 = vmatprep.subr.mxu0 %v449
    %1403 = vmatpush1.msra.mxu0 %v448
    %1404 = vmatprep.subr.mxu0 %v453
    %1405 = vmatpush1.msra.mxu0 %v452
    %1406 = vmatprep.subr.mxu0 %v457
    %1407 = vmatpush1.msra.mxu0 %v456
    %1408 = vmatprep.subr.mxu0 %v461
    %1409 = vmatpush1.msra.mxu0 %v460
    %1410 = vmatprep.subr.mxu0 0.0
    %1411 = vmatpush1.msra.mxu0 0.0
    %1412 = vmatprep.subr.mxu0 0.0
    %1413 = vmatpush1.msra.mxu0 0.0
    %1414 = vmatprep.subr.mxu0 0.0
    %1415 = vmatpush1.msra.mxu0 0.0
    %1416 = vmatprep.subr.mxu0 0.0
    %1417 = vmatpush1.msra.mxu0 0.0
    %1418 = vmatprep.subr.mxu0 0.0
    %1419 = vmatpush1.msra.mxu0 0.0
    %1420 = vmatprep.subr.mxu0 0.0
    %1421 = vmatpush1.msra.mxu0 0.0
    %1422 = vmatprep.subr.mxu0 0.0
    %1423 = vmatpush1.msra.mxu0 0.0
    %1424 = vmatprep.subr.mxu0 0.0
    %1425 = vmatpush1.msra.mxu0 0.0
    %1426 = vmatprep.subr.mxu0 0.0
    %1427 = vmatpush1.msra.mxu0 0.0
    %1428 = vmatprep.subr.mxu0 0.0
    %1429 = vmatpush1.msra.mxu0 0.0
    %1430 = vmatprep.subr.mxu0 0.0
    %1431 = vmatpush1.msra.mxu0 0.0
    %1432 = vmatprep.subr.mxu0 0.0
    %1433 = vmatpush1.msra.mxu0 0.0
    %1434 = vmatprep.subr.mxu0 0.0
    %1435 = vmatpush1.msra.mxu0 0.0
    %1436 = vmatprep.subr.mxu0 0.0
    %1437 = vmatpush1.msra.mxu0 0.0
    %1438 = vmatprep.subr.mxu0 0.0
    %1439 = vmatpush1.msra.mxu0 0.0
    %1440 = vmatprep.subr.mxu0 0.0
    %1441 = vmatpush1.msra.mxu0 0.0
    %1442 = vmatprep.mubr.f32.mxu0 0.0
    %1443 = vmatmul.mubr.f32.gmra.mrb[0].mxu0 %v1301
    %v1444 = vpop.f32.mrb[0].mxu0
    %v1445 = vadd.f32 0.0, %v1444
    %v1446 = vpop.f32.mrb[0].mxu0
    %v1447 = vadd.f32 0.0, %v1446
    %1448 = vdwg.mxu0
    %v1449 = vadd.f32 %v1303, %v1374
    %v1450 = vadd.f32 %v1304, %v1376
    %v1451 = vadd.f32 %v1305, %v1445
    %v1452 = vadd.f32 %v1306, %v1447
    %v1453 = vmul.f32 %v1449, 0.5
    %v1454 = vmul.f32 %v1450, 0.5
    %v1455 = vmul.f32 %v1451, 0.5
    %v1456 = vtanh.pop %v1453
    %v1457 = vtanh.pop %v1454
    %v1458 = vtanh.pop %v1455
    %v1459 = vmul.f32 %v1456, 0.5
    %v1460 = vmul.f32 %v1457, 0.5
    %v1461 = vmul.f32 %v1458, 0.5
    %v1462 = vadd.f32 %v1459, 0.5
    %v1463 = vadd.f32 %v1460, 0.5
    %v1464 = vadd.f32 %v1461, 0.5
    %v1465 = vtanh.pop %v1452
    %v1466 = vmul.f32 %v1463, %v1299
    %v1467 = vmul.f32 %v1462, %v1465
    %v1468 = vadd.f32 %v1466, %v1467
    %v1469 = vtanh.pop %v1468
    %v1470 = vmul.f32 %v1464, %v1469
    %s1471 = scalar_lea.vmem [#allocation2], 192
    %v1472 = vld [vmem:[%s1471] sm:$0xff]
    %v1473 = vld [vmem:[%s1471 + $0x8] sm:$0xff]
    %v1474 = vld [vmem:[%s1471 + $0x10] sm:$0xff]
    %v1475 = vld [vmem:[%s1471 + $0x18] sm:$0xff]
    %1476 = vmatprep.subr.mxu0 %v399
    %1477 = vmatpush1.msra.mxu0 %v398
    %1478 = vmatprep.subr.mxu0 %v403
    %1479 = vmatpush1.msra.mxu0 %v402
    %1480 = vmatprep.subr.mxu0 %v407
    %1481 = vmatpush1.msra.mxu0 %v406
    %1482 = vmatprep.subr.mxu0 %v411
    %1483 = vmatpush1.msra.mxu0 %v410
    %1484 = vmatprep.subr.mxu0 %v415
    %1485 = vmatpush1.msra.mxu0 %v414
    %1486 = vmatprep.subr.mxu0 %v419
    %1487 = vmatpush1.msra.mxu0 %v418
    %1488 = vmatprep.subr.mxu0 %v423
    %1489 = vmatpush1.msra.mxu0 %v422
    %1490 = vmatprep.subr.mxu0 %v427
    %1491 = vmatpush1.msra.mxu0 %v426
    %1492 = vmatprep.subr.mxu0 %v431
    %1493 = vmatpush1.msra.mxu0 %v430
    %1494 = vmatprep.subr.mxu0 %v435
    %1495 = vmatpush1.msra.mxu0 %v434
    %1496 = vmatprep.subr.mxu0 %v439
    %1497 = vmatpush1.msra.mxu0 %v438
    %1498 = vmatprep.subr.mxu0 %v443
    %1499 = vmatpush1.msra.mxu0 %v442
    %1500 = vmatprep.subr.mxu0 %v447
    %1501 = vmatpush1.msra.mxu0 %v446
    %1502 = vmatprep.subr.mxu0 %v451
    %1503 = vmatpush1.msra.mxu0 %v450
    %1504 = vmatprep.subr.mxu0 %v455
    %1505 = vmatpush1.msra.mxu0 %v454
    %1506 = vmatprep.subr.mxu0 %v459
    %1507 = vmatpush1.msra.mxu0 %v458
    %1508 = vmatprep.subr.mxu0 0.0
    %1509 = vmatpush1.msra.mxu0 0.0
    %1510 = vmatprep.subr.mxu0 0.0
    %1511 = vmatpush1.msra.mxu0 0.0
    %1512 = vmatprep.subr.mxu0 0.0
    %1513 = vmatpush1.msra.mxu0 0.0
    %1514 = vmatprep.subr.mxu0 0.0
    %1515 = vmatpush1.msra.mxu0 0.0
    %1516 = vmatprep.subr.mxu0 0.0
    %1517 = vmatpush1.msra.mxu0 0.0
    %1518 = vmatprep.subr.mxu0 0.0
    %1519 = vmatpush1.msra.mxu0 0.0
    %1520 = vmatprep.subr.mxu0 0.0
    %1521 = vmatpush1.msra.mxu0 0.0
    %1522 = vmatprep.subr.mxu0 0.0
    %1523 = vmatpush1.msra.mxu0 0.0
    %1524 = vmatprep.subr.mxu0 0.0
    %1525 = vmatpush1.msra.mxu0 0.0
    %1526 = vmatprep.subr.mxu0 0.0
    %1527 = vmatpush1.msra.mxu0 0.0
    %1528 = vmatprep.subr.mxu0 0.0
    %1529 = vmatpush1.msra.mxu0 0.0
    %1530 = vmatprep.subr.mxu0 0.0
    %1531 = vmatpush1.msra.mxu0 0.0
    %1532 = vmatprep.subr.mxu0 0.0
    %1533 = vmatpush1.msra.mxu0 0.0
    %1534 = vmatprep.subr.mxu0 0.0
    %1535 = vmatpush1.msra.mxu0 0.0
    %1536 = vmatprep.subr.mxu0 0.0
    %1537 = vmatpush1.msra.mxu0 0.0
    %1538 = vmatprep.subr.mxu0 0.0
    %1539 = vmatpush1.msra.mxu0 0.0
    %1540 = vmatprep.mubr.f32.mxu0 0.0
    %1541 = vmatmul.mubr.f32.gmra.mrb[0].mxu0 %v1470
    %v1542 = vpop.f32.mrb[0].mxu0
    %v1543 = vadd.f32 0.0, %v1542
    %v1544 = vpop.f32.mrb[0].mxu0
    %v1545 = vadd.f32 0.0, %v1544
    %1546 = vdwg.mxu0
    %1547 = vmatprep.subr.mxu0 %v401
    %1548 = vmatpush1.msra.mxu0 %v400
    %1549 = vmatprep.subr.mxu0 %v405
    %1550 = vmatpush1.msra.mxu0 %v404
    %1551 = vmatprep.subr.mxu0 %v409
    %1552 = vmatpush1.msra.mxu0 %v408
    %1553 = vmatprep.subr.mxu0 %v413
    %1554 = vmatpush1.msra.mxu0 %v412
    %1555 = vmatprep.subr.mxu0 %v417
    %1556 = vmatpush1.msra.mxu0 %v416
    %1557 = vmatprep.subr.mxu0 %v421
    %1558 = vmatpush1.msra.mxu0 %v420
    %1559 = vmatprep.subr.mxu0 %v425
    %1560 = vmatpush1.msra.mxu0 %v424
    %1561 = vmatprep.subr.mxu0 %v429
    %1562 = vmatpush1.msra.mxu0 %v428
    %1563 = vmatprep.subr.mxu0 %v433
    %1564 = vmatpush1.msra.mxu0 %v432
    %1565 = vmatprep.subr.mxu0 %v437
    %1566 = vmatpush1.msra.mxu0 %v436
    %1567 = vmatprep.subr.mxu0 %v441
    %1568 = vmatpush1.msra.mxu0 %v440
    %1569 = vmatprep.subr.mxu0 %v445
    %1570 = vmatpush1.msra.mxu0 %v444
    %1571 = vmatprep.subr.mxu0 %v449
    %1572 = vmatpush1.msra.mxu0 %v448
    %1573 = vmatprep.subr.mxu0 %v453
    %1574 = vmatpush1.msra.mxu0 %v452
    %1575 = vmatprep.subr.mxu0 %v457
    %1576 = vmatpush1.msra.mxu0 %v456
    %1577 = vmatprep.subr.mxu0 %v461
    %1578 = vmatpush1.msra.mxu0 %v460
    %1579 = vmatprep.subr.mxu0 0.0
    %1580 = vmatpush1.msra.mxu0 0.0
    %1581 = vmatprep.subr.mxu0 0.0
    %1582 = vmatpush1.msra.mxu0 0.0
    %1583 = vmatprep.subr.mxu0 0.0
    %1584 = vmatpush1.msra.mxu0 0.0
    %1585 = vmatprep.subr.mxu0 0.0
    %1586 = vmatpush1.msra.mxu0 0.0
    %1587 = vmatprep.subr.mxu0 0.0
    %1588 = vmatpush1.msra.mxu0 0.0
    %1589 = vmatprep.subr.mxu0 0.0
    %1590 = vmatpush1.msra.mxu0 0.0
    %1591 = vmatprep.subr.mxu0 0.0
    %1592 = vmatpush1.msra.mxu0 0.0
    %1593 = vmatprep.subr.mxu0 0.0
    %1594 = vmatpush1.msra.mxu0 0.0
    %1595 = vmatprep.subr.mxu0 0.0
    %1596 = vmatpush1.msra.mxu0 0.0
    %1597 = vmatprep.subr.mxu0 0.0
    %1598 = vmatpush1.msra.mxu0 0.0
    %1599 = vmatprep.subr.mxu0 0.0
    %1600 = vmatpush1.msra.mxu0 0.0
    %1601 = vmatprep.subr.mxu0 0.0
    %1602 = vmatpush1.msra.mxu0 0.0
    %1603 = vmatprep.subr.mxu0 0.0
    %1604 = vmatpush1.msra.mxu0 0.0
    %1605 = vmatprep.subr.mxu0 0.0
    %1606 = vmatpush1.msra.mxu0 0.0
    %1607 = vmatprep.subr.mxu0 0.0
    %1608 = vmatpush1.msra.mxu0 0.0
    %1609 = vmatprep.subr.mxu0 0.0
    %1610 = vmatpush1.msra.mxu0 0.0
    %1611 = vmatprep.mubr.f32.mxu0 0.0
    %1612 = vmatmul.mubr.f32.gmra.mrb[0].mxu0 %v1470
    %v1613 = vpop.f32.mrb[0].mxu0
    %v1614 = vadd.f32 0.0, %v1613
    %v1615 = vpop.f32.mrb[0].mxu0
    %v1616 = vadd.f32 0.0, %v1615
    %1617 = vdwg.mxu0
    %v1618 = vadd.f32 %v1472, %v1543
    %v1619 = vadd.f32 %v1473, %v1545
    %v1620 = vadd.f32 %v1474, %v1614
    %v1621 = vadd.f32 %v1475, %v1616
    %v1622 = vmul.f32 %v1618, 0.5
    %v1623 = vmul.f32 %v1619, 0.5
    %v1624 = vmul.f32 %v1620, 0.5
    %v1625 = vtanh.pop %v1622
    %v1626 = vtanh.pop %v1623
    %v1627 = vtanh.pop %v1624
    %v1628 = vmul.f32 %v1625, 0.5
    %v1629 = vmul.f32 %v1626, 0.5
    %v1630 = vmul.f32 %v1627, 0.5
    %v1631 = vadd.f32 %v1628, 0.5
    %v1632 = vadd.f32 %v1629, 0.5
    %v1633 = vadd.f32 %v1630, 0.5
    %v1634 = vtanh.pop %v1621
    %v1635 = vmul.f32 %v1632, %v1468
    %v1636 = vmul.f32 %v1631, %v1634
    %v1637 = vadd.f32 %v1635, %v1636
    %v1638 = vtanh.pop %v1637
    %v1639 = vmul.f32 %v1633, %v1638
    %s1640 = scalar_lea.vmem [#allocation2], 224
    %v1641 = vld [vmem:[%s1640] sm:$0xff]
    %v1642 = vld [vmem:[%s1640 + $0x8] sm:$0xff]
    %v1643 = vld [vmem:[%s1640 + $0x10] sm:$0xff]
    %v1644 = vld [vmem:[%s1640 + $0x18] sm:$0xff]
    %1645 = vmatprep.subr.mxu0 %v399
    %1646 = vmatpush1.msra.mxu0 %v398
    %1647 = vmatprep.subr.mxu0 %v403
    %1648 = vmatpush1.msra.mxu0 %v402
    %1649 = vmatprep.subr.mxu0 %v407
    %1650 = vmatpush1.msra.mxu0 %v406
    %1651 = vmatprep.subr.mxu0 %v411
    %1652 = vmatpush1.msra.mxu0 %v410
    %1653 = vmatprep.subr.mxu0 %v415
    %1654 = vmatpush1.msra.mxu0 %v414
    %1655 = vmatprep.subr.mxu0 %v419
    %1656 = vmatpush1.msra.mxu0 %v418
    %1657 = vmatprep.subr.mxu0 %v423
    %1658 = vmatpush1.msra.mxu0 %v422
    %1659 = vmatprep.subr.mxu0 %v427
    %1660 = vmatpush1.msra.mxu0 %v426
    %1661 = vmatprep.subr.mxu0 %v431
    %1662 = vmatpush1.msra.mxu0 %v430
    %1663 = vmatprep.subr.mxu0 %v435
    %1664 = vmatpush1.msra.mxu0 %v434
    %1665 = vmatprep.subr.mxu0 %v439
    %1666 = vmatpush1.msra.mxu0 %v438
    %1667 = vmatprep.subr.mxu0 %v443
    %1668 = vmatpush1.msra.mxu0 %v442
    %1669 = vmatprep.subr.mxu0 %v447
    %1670 = vmatpush1.msra.mxu0 %v446
    %1671 = vmatprep.subr.mxu0 %v451
    %1672 = vmatpush1.msra.mxu0 %v450
    %1673 = vmatprep.subr.mxu0 %v455
    %1674 = vmatpush1.msra.mxu0 %v454
    %1675 = vmatprep.subr.mxu0 %v459
    %1676 = vmatpush1.msra.mxu0 %v458
    %1677 = vmatprep.subr.mxu0 0.0
    %1678 = vmatpush1.msra.mxu0 0.0
    %1679 = vmatprep.subr.mxu0 0.0
    %1680 = vmatpush1.msra.mxu0 0.0
    %1681 = vmatprep.subr.mxu0 0.0
    %1682 = vmatpush1.msra.mxu0 0.0
    %1683 = vmatprep.subr.mxu0 0.0
    %1684 = vmatpush1.msra.mxu0 0.0
    %1685 = vmatprep.subr.mxu0 0.0
    %1686 = vmatpush1.msra.mxu0 0.0
    %1687 = vmatprep.subr.mxu0 0.0
    %1688 = vmatpush1.msra.mxu0 0.0
    %1689 = vmatprep.subr.mxu0 0.0
    %1690 = vmatpush1.msra.mxu0 0.0
    %1691 = vmatprep.subr.mxu0 0.0
    %1692 = vmatpush1.msra.mxu0 0.0
    %1693 = vmatprep.subr.mxu0 0.0
    %1694 = vmatpush1.msra.mxu0 0.0
    %1695 = vmatprep.subr.mxu0 0.0
    %1696 = vmatpush1.msra.mxu0 0.0
    %1697 = vmatprep.subr.mxu0 0.0
    %1698 = vmatpush1.msra.mxu0 0.0
    %1699 = vmatprep.subr.mxu0 0.0
    %1700 = vmatpush1.msra.mxu0 0.0
    %1701 = vmatprep.subr.mxu0 0.0
    %1702 = vmatpush1.msra.mxu0 0.0
    %1703 = vmatprep.subr.mxu0 0.0
    %1704 = vmatpush1.msra.mxu0 0.0
    %1705 = vmatprep.subr.mxu0 0.0
    %1706 = vmatpush1.msra.mxu0 0.0
    %1707 = vmatprep.subr.mxu0 0.0
    %1708 = vmatpush1.msra.mxu0 0.0
    %1709 = vmatprep.mubr.f32.mxu0 0.0
    %1710 = vmatmul.mubr.f32.gmra.mrb[0].mxu0 %v1639
    %v1711 = vpop.f32.mrb[0].mxu0
    %v1712 = vadd.f32 0.0, %v1711
    %v1713 = vpop.f32.mrb[0].mxu0
    %v1714 = vadd.f32 0.0, %v1713
    %1715 = vdwg.mxu0
    %1716 = vmatprep.subr.mxu0 %v401
    %1717 = vmatpush1.msra.mxu0 %v400
    %1718 = vmatprep.subr.mxu0 %v405
    %1719 = vmatpush1.msra.mxu0 %v404
    %1720 = vmatprep.subr.mxu0 %v409
    %1721 = vmatpush1.msra.mxu0 %v408
    %1722 = vmatprep.subr.mxu0 %v413
    %1723 = vmatpush1.msra.mxu0 %v412
    %1724 = vmatprep.subr.mxu0 %v417
    %1725 = vmatpush1.msra.mxu0 %v416
    %1726 = vmatprep.subr.mxu0 %v421
    %1727 = vmatpush1.msra.mxu0 %v420
    %1728 = vmatprep.subr.mxu0 %v425
    %1729 = vmatpush1.msra.mxu0 %v424
    %1730 = vmatprep.subr.mxu0 %v429
    %1731 = vmatpush1.msra.mxu0 %v428
    %1732 = vmatprep.subr.mxu0 %v433
    %1733 = vmatpush1.msra.mxu0 %v432
    %1734 = vmatprep.subr.mxu0 %v437
    %1735 = vmatpush1.msra.mxu0 %v436
    %1736 = vmatprep.subr.mxu0 %v441
    %1737 = vmatpush1.msra.mxu0 %v440
    %1738 = vmatprep.subr.mxu0 %v445
    %1739 = vmatpush1.msra.mxu0 %v444
    %1740 = vmatprep.subr.mxu0 %v449
    %1741 = vmatpush1.msra.mxu0 %v448
    %1742 = vmatprep.subr.mxu0 %v453
    %1743 = vmatpush1.msra.mxu0 %v452
    %1744 = vmatprep.subr.mxu0 %v457
    %1745 = vmatpush1.msra.mxu0 %v456
    %1746 = vmatprep.subr.mxu0 %v461
    %1747 = vmatpush1.msra.mxu0 %v460
    %1748 = vmatprep.subr.mxu0 0.0
    %1749 = vmatpush1.msra.mxu0 0.0
    %1750 = vmatprep.subr.mxu0 0.0
    %1751 = vmatpush1.msra.mxu0 0.0
    %1752 = vmatprep.subr.mxu0 0.0
    %1753 = vmatpush1.msra.mxu0 0.0
    %1754 = vmatprep.subr.mxu0 0.0
    %1755 = vmatpush1.msra.mxu0 0.0
    %1756 = vmatprep.subr.mxu0 0.0
    %1757 = vmatpush1.msra.mxu0 0.0
    %1758 = vmatprep.subr.mxu0 0.0
    %1759 = vmatpush1.msra.mxu0 0.0
    %1760 = vmatprep.subr.mxu0 0.0
    %1761 = vmatpush1.msra.mxu0 0.0
    %1762 = vmatprep.subr.mxu0 0.0
    %1763 = vmatpush1.msra.mxu0 0.0
    %1764 = vmatprep.subr.mxu0 0.0
    %1765 = vmatpush1.msra.mxu0 0.0
    %1766 = vmatprep.subr.mxu0 0.0
    %1767 = vmatpush1.msra.mxu0 0.0
    %1768 = vmatprep.subr.mxu0 0.0
    %1769 = vmatpush1.msra.mxu0 0.0
    %1770 = vmatprep.subr.mxu0 0.0
    %1771 = vmatpush1.msra.mxu0 0.0
    %1772 = vmatprep.subr.mxu0 0.0
    %1773 = vmatpush1.msra.mxu0 0.0
    %1774 = vmatprep.subr.mxu0 0.0
    %1775 = vmatpush1.msra.mxu0 0.0
    %1776 = vmatprep.subr.mxu0 0.0
    %1777 = vmatpush1.msra.mxu0 0.0
    %1778 = vmatprep.subr.mxu0 0.0
    %1779 = vmatpush1.msra.mxu0 0.0
    %1780 = vmatprep.mubr.f32.mxu0 0.0
    %1781 = vmatmul.mubr.f32.gmra.mrb[0].mxu0 %v1639
    %v1782 = vpop.f32.mrb[0].mxu0
    %v1783 = vadd.f32 0.0, %v1782
    %v1784 = vpop.f32.mrb[0].mxu0
    %v1785 = vadd.f32 0.0, %v1784
    %1786 = vdwg.mxu0
    %v1787 = vadd.f32 %v1641, %v1712
    %v1788 = vadd.f32 %v1642, %v1714
    %v1789 = vadd.f32 %v1643, %v1783
    %v1790 = vadd.f32 %v1644, %v1785
    %v1791 = vmul.f32 %v1787, 0.5
    %v1792 = vmul.f32 %v1788, 0.5
    %v1793 = vmul.f32 %v1789, 0.5
    %v1794 = vtanh.pop %v1791
    %v1795 = vtanh.pop %v1792
    %v1796 = vtanh.pop %v1793
    %v1797 = vmul.f32 %v1794, 0.5
    %v1798 = vmul.f32 %v1795, 0.5
    %v1799 = vmul.f32 %v1796, 0.5
    %v1800 = vadd.f32 %v1797, 0.5
    %v1801 = vadd.f32 %v1798, 0.5
    %v1802 = vadd.f32 %v1799, 0.5
    %v1803 = vtanh.pop %v1790
    %v1804 = vmul.f32 %v1801, %v1637
    %v1805 = vmul.f32 %v1800, %v1803
    %v1806 = vadd.f32 %v1804, %v1805
    %v1807 = vtanh.pop %v1806
    %v1808 = vmul.f32 %v1802, %v1807
    %v1809 = vld [vmem:[#allocation9] sm:$0xff]
    %v1810 = vld [vmem:[#allocation9 + $0x8] sm:$0xff]
    %v1811 = vld [vmem:[#allocation9 + $0x10] sm:$0xff]
    %v1812 = vld [vmem:[#allocation9 + $0x18] sm:$0xff]
    %v1813 = vld [vmem:[#allocation9 + $0x20] sm:$0xff]
    %v1814 = vld [vmem:[#allocation9 + $0x28] sm:$0xff]
    %v1815 = vld [vmem:[#allocation9 + $0x30] sm:$0xff]
    %v1816 = vld [vmem:[#allocation9 + $0x38] sm:$0xff]
    %v1817 = vld [vmem:[#allocation9 + $0x40] sm:$0xff]
    %v1818 = vld [vmem:[#allocation9 + $0x48] sm:$0xff]
    %v1819 = vld [vmem:[#allocation9 + $0x50] sm:$0xff]
    %v1820 = vld [vmem:[#allocation9 + $0x58] sm:$0xff]
    %v1821 = vld [vmem:[#allocation9 + $0x60] sm:$0xff]
    %v1822 = vld [vmem:[#allocation9 + $0x68] sm:$0xff]
    %v1823 = vld [vmem:[#allocation9 + $0x70] sm:$0xff]
    %v1824 = vld [vmem:[#allocation9 + $0x78] sm:$0xff]
    %v1825 = vld [vmem:[%s5] sm:$0x1]
    %v1827 = vlaneseq
    %v1828 = vshrl.u32 %v1827, 7
    %v1829 = vsub.s32 0, %v1828
    %v1830 = vrot.slane %v1825, %v1829
    %1832 = vmatprep.subr.mxu0 0.0
    %1833 = vmatpush1.msra.mxu0 %v1809
    %1834 = vmatprep.subr.mxu0 0.0
    %1835 = vmatpush1.msra.mxu0 %v1810
    %1836 = vmatprep.subr.mxu0 0.0
    %1837 = vmatpush1.msra.mxu0 %v1811
    %1838 = vmatprep.subr.mxu0 0.0
    %1839 = vmatpush1.msra.mxu0 %v1812
    %1840 = vmatprep.subr.mxu0 0.0
    %1841 = vmatpush1.msra.mxu0 %v1813
    %1842 = vmatprep.subr.mxu0 0.0
    %1843 = vmatpush1.msra.mxu0 %v1814
    %1844 = vmatprep.subr.mxu0 0.0
    %1845 = vmatpush1.msra.mxu0 %v1815
    %1846 = vmatprep.subr.mxu0 0.0
    %1847 = vmatpush1.msra.mxu0 %v1816
    %1848 = vmatprep.subr.mxu0 0.0
    %1849 = vmatpush1.msra.mxu0 %v1817
    %1850 = vmatprep.subr.mxu0 0.0
    %1851 = vmatpush1.msra.mxu0 %v1818
    %1852 = vmatprep.subr.mxu0 0.0
    %1853 = vmatpush1.msra.mxu0 %v1819
    %1854 = vmatprep.subr.mxu0 0.0
    %1855 = vmatpush1.msra.mxu0 %v1820
    %1856 = vmatprep.subr.mxu0 0.0
    %1857 = vmatpush1.msra.mxu0 %v1821
    %1858 = vmatprep.subr.mxu0 0.0
    %1859 = vmatpush1.msra.mxu0 %v1822
    %1860 = vmatprep.subr.mxu0 0.0
    %1861 = vmatpush1.msra.mxu0 %v1823
    %1862 = vmatprep.subr.mxu0 0.0
    %1863 = vmatpush1.msra.mxu0 %v1824
    %1864 = vmatprep.subr.mxu0 0.0
    %1865 = vmatpush1.msra.mxu0 0.0
    %1866 = vmatprep.subr.mxu0 0.0
    %1867 = vmatpush1.msra.mxu0 0.0
    %1868 = vmatprep.subr.mxu0 0.0
    %1869 = vmatpush1.msra.mxu0 0.0
    %1870 = vmatprep.subr.mxu0 0.0
    %1871 = vmatpush1.msra.mxu0 0.0
    %1872 = vmatprep.subr.mxu0 0.0
    %1873 = vmatpush1.msra.mxu0 0.0
    %1874 = vmatprep.subr.mxu0 0.0
    %1875 = vmatpush1.msra.mxu0 0.0
    %1876 = vmatprep.subr.mxu0 0.0
    %1877 = vmatpush1.msra.mxu0 0.0
    %1878 = vmatprep.subr.mxu0 0.0
    %1879 = vmatpush1.msra.mxu0 0.0
    %1880 = vmatprep.subr.mxu0 0.0
    %1881 = vmatpush1.msra.mxu0 0.0
    %1882 = vmatprep.subr.mxu0 0.0
    %1883 = vmatpush1.msra.mxu0 0.0
    %1884 = vmatprep.subr.mxu0 0.0
    %1885 = vmatpush1.msra.mxu0 0.0
    %1886 = vmatprep.subr.mxu0 0.0
    %1887 = vmatpush1.msra.mxu0 0.0
    %1888 = vmatprep.subr.mxu0 0.0
    %1889 = vmatpush1.msra.mxu0 0.0
    %1890 = vmatprep.subr.mxu0 0.0
    %1891 = vmatpush1.msra.mxu0 0.0
    %1892 = vmatprep.subr.mxu0 0.0
    %1893 = vmatpush1.msra.mxu0 0.0
    %1894 = vmatprep.subr.mxu0 0.0
    %1895 = vmatpush1.msra.mxu0 0.0
    %1896 = vmatprep.mubr.f32.mxu0 0.0
    %1897 = vmatmul.mubr.f32.gmra.mrb[0].mxu0 %v1808
    %v1898 = vpop.f32.mrb[0].mxu0
    %v1899 = vadd.f32 %v1830, %v1898
    %v1900 = vpop.f32.mrb[0].mxu0
    %1901 = vdwg.mxu0
    %1902 = vst [vmem:[#allocation11] sm:$0xff] %v1899
    // Predicated region
    $region42: #{tpu_custom_call.1} parent=1 // pred_check
      _
    $region43: #{tpu_custom_call.1} parent=1 // pred_check_branch
      %1904 = sbr.rel (0) target = $region45
    $region44: #{tpu_custom_call.1} parent=1 // pred_region
      %s1906 = ssub.s32 128, 128
      %1907 = vsyncadd [#allocation5], %s1906
      %s1909 = sshll.u32 [#allocation11], 4
      %s1910 = int_to_ptr.vmem [resolvable:$true] %s1909
      %1912 = dma.vmem_to_hbm [thread:$0]  %s1910, 128, %s6, [#allocation5]
    $region45: #{tpu_custom_call.1} parent=1 // pred_fallthru
      _
    // Predicated region
    $region46: #{tpu_custom_call.1} parent=1 // pred_check
      _
    $region47: #{tpu_custom_call.1} parent=1 // pred_check_branch
      %1914 = sbr.rel (0) target = $region49
    $region48: #{tpu_custom_call.1} parent=1 // pred_region
      %1915 = dma.done [#allocation5], 128
    $region49: #{tpu_custom_call.1} parent=1 // pred_fallthru
      _
    %1916 = vsyncpa [#allocation4], 1
    %1917 = vsyncpa [#allocation7], 1
    %1918 = vsyncpa [#allocation10], 1
    %1919 = vsyncpa [#allocation5], 1

</llo_original>
